<compile_context>
chip_gen: v5e
topology: v5e:2x2
jax: 0.10.0
libtpu: 0.0.40
codegen_flags: <defaults>
</compile_context>

<pallas_src>
import functools
import math

import jax
import jax.numpy as jnp
from jax.experimental import pallas as pl
from jax.experimental.pallas import tpu as pltpu


DEFAULT_MASK_VALUE = -0.7 * float(jnp.finfo(jnp.float32).max)


# ---------------------------------------------------------------------------
# Capability / budget helpers
# ---------------------------------------------------------------------------
@functools.lru_cache(maxsize=None)
def _single_buffering_supported():
    """Probe whether pipeline_mode=pl.Buffered(1) is accepted by this JAX/TPU."""
    if not hasattr(pl, "Buffered"):
        return False
    try:
        def _copy(x_ref, o_ref):
            o_ref[...] = x_ref[...]

        x = jnp.arange(8 * 128, dtype=jnp.float32).reshape(8, 128)
        y = pl.pallas_call(
            _copy,
            out_shape=jax.ShapeDtypeStruct((8, 128), jnp.float32),
            grid=(2,),
            in_specs=[pl.BlockSpec((8, 128), lambda i: (0, 0),
                                   pipeline_mode=pl.Buffered(1))],
            out_specs=pl.BlockSpec((8, 128), lambda i: (0, 0)),
        )(x)
        return bool(jnp.array_equal(jax.block_until_ready(y), x))
    except Exception:  # pragma: no cover - depends on installed jax version
        return False


def _resident_spec(block_shape, index_map):
    """BlockSpec for a grid-constant operand (weights / biases).

    The constant index map keeps the block VMEM-resident (fetched once, no
    re-DMA); when supported, also request a single buffer so resident weights
    do not pay a 2x double-buffering footprint (v7x: 64 MiB VMEM per core).
    """
    if _single_buffering_supported():
        return pl.BlockSpec(block_shape, index_map, pipeline_mode=pl.Buffered(1))
    return pl.BlockSpec(block_shape, index_map)


@functools.lru_cache(maxsize=None)
def _vmem_limit_bytes():
    """Per-generation VMEM budget: physical capacity minus compiler headroom."""
    cap = None
    try:
        cap = int(pltpu.get_tpu_info().vmem_capacity_bytes)
    except Exception:  # pragma: no cover - older jax / info unavailable
        cap = None
    if not cap or cap <= 0:
        cap = 64 * 1024 * 1024              # conservative: v7x per-core VMEM
    headroom = 16 * 1024 * 1024             # compiler-internal scratch / spills
    return int(max(32 * 1024 * 1024, min(cap - headroom, 100 * 1024 * 1024)))


def _pick_tile(dim, desired):
    """Largest tile <= desired that divides dim (falls back to the full dim)."""
    t = min(desired, dim)
    if dim % t != 0:
        # TODO(synk): ragged-tail masking instead of falling back to the full
        # extent (a full-S tile can blow the VMEM budget for awkward lengths).
        t = dim
    return t


# ---------------------------------------------------------------------------
# Kernel 1: fused QKV projection (one lane-dense GEMM per seq tile)
# ---------------------------------------------------------------------------
def _qkv_proj_kernel(x_ref, w_ref, b_ref, q_ref, k_ref, v_ref):
    """y = x @ W_qkv + b_qkv, split into q/k/v column groups.

    The 1/sqrt(dh) softmax scale is pre-folded into the q columns of W/b on
    the wrapper side, so this is a plain GEMM + bias + column split.
    """
    d = q_ref.shape[-1]
    y = jnp.dot(x_ref[0], w_ref[...], preferred_element_type=jnp.float32)
    y = y + b_ref[...].astype(jnp.float32)                 # (ts, 3D) f32
    q_ref[0] = y[:, :d].astype(q_ref.dtype)
    k_ref[0] = y[:, d:2 * d].astype(k_ref.dtype)
    v_ref[0] = y[:, 2 * d:].astype(v_ref.dtype)


# ---------------------------------------------------------------------------
# Kernel 2: flash attention (all heads per step) + fused out_proj
# ---------------------------------------------------------------------------
def _attn_tile(q_ref, k_ref, v_ref, wo_ref, bo_ref, o_ref,
               m_scr, l_scr, acc_scr, *, qi, kv, is_last, causal,
               tq, tk, dh, n_heads):
    """One (q-tile, kv-tile) online-softmax step over all heads.

    q/k/v tiles are (1, t, D) with heads packed along the lane axis; the
    softmax scale is already folded into q.  Running max / sum hold one f32
    column per head; the weighted-V accumulator keeps heads packed.  On the
    last kv tile the accumulator is normalized and pushed through the fused
    out_proj matmul (+ bias) into the output tile.
    """
    @pl.when(kv == 0)
    def _init():
        m_scr[...] = jnp.full_like(m_scr, -jnp.inf)
        l_scr[...] = jnp.zeros_like(l_scr)
        acc_scr[...] = jnp.zeros_like(acc_scr)

    q = q_ref[0]            # (tq, D)
    k = k_ref[0]            # (tk, D)
    v = v_ref[0]            # (tk, D)

    if causal:
        row = qi * tq + jax.lax.broadcasted_iota(jnp.int32, (tq, tk), 0)
        col = kv * tk + jax.lax.broadcasted_iota(jnp.int32, (tq, tk), 1)
        above_diag = col > row

    # All heads handled in one grid step (head-group g == n_heads): H x fewer
    # grid steps and full-width (lane-dense) K/V DMAs.  Static Python unroll;
    # SD head counts (4-20) keep the trace small.
    for h in range(n_heads):
        sl = slice(h * dh, (h + 1) * dh)
        s = jax.lax.dot_general(q[:, sl], k[:, sl], (((1,), (1,)), ((), ())),
                                preferred_element_type=jnp.float32)  # (tq, tk)
        if causal:
            s = jnp.where(above_diag, DEFAULT_MASK_VALUE, s)
        m_prev = m_scr[:, h:h + 1]                                    # (tq, 1)
        m_new = jnp.maximum(m_prev, jnp.max(s, axis=-1, keepdims=True))
        alpha = jnp.exp(m_prev - m_new)
        p = jnp.exp(s - m_new)                                        # (tq, tk) f32
        l_scr[:, h:h + 1] = alpha * l_scr[:, h:h + 1] + jnp.sum(
            p, axis=-1, keepdims=True)
        acc_scr[:, sl] = alpha * acc_scr[:, sl] + jnp.dot(
            p.astype(v.dtype), v[:, sl], preferred_element_type=jnp.float32)
        m_scr[:, h:h + 1] = m_new

    @pl.when(is_last)
    def _finalize():
        for h in range(n_heads):
            sl = slice(h * dh, (h + 1) * dh)
            inv_l = pl.reciprocal(l_scr[:, h:h + 1], approx=True)     # EUP slot
            acc_scr[:, sl] = acc_scr[:, sl] * inv_l
        y = jnp.dot(acc_scr[...].astype(wo_ref.dtype), wo_ref[...],
                    preferred_element_type=jnp.float32)               # (tq, D)
        o_ref[0] = (y + bo_ref[...].astype(jnp.float32)).astype(o_ref.dtype)


def _flash_attn_kernel(q_ref, k_ref, v_ref, wo_ref, bo_ref, o_ref,
                       m_scr, l_scr, acc_scr, *, tq, tk, dh, n_heads):
    kv = pl.program_id(2)
    _attn_tile(q_ref, k_ref, v_ref, wo_ref, bo_ref, o_ref,
               m_scr, l_scr, acc_scr,
               qi=pl.program_id(1), kv=kv,
               is_last=(kv == pl.num_programs(2) - 1), causal=False,
               tq=tq, tk=tk, dh=dh, n_heads=n_heads)


def _flash_attn_kernel_causal(qi_tab_ref, kv_tab_ref, last_tab_ref,
                              q_ref, k_ref, v_ref, wo_ref, bo_ref, o_ref,
                              m_scr, l_scr, acc_scr, *, tq, tk, dh, n_heads):
    t = pl.program_id(1)
    _attn_tile(q_ref, k_ref, v_ref, wo_ref, bo_ref, o_ref,
               m_scr, l_scr, acc_scr,
               qi=qi_tab_ref[t], kv=kv_tab_ref[t],
               is_last=(last_tab_ref[t] != 0), causal=True,
               tq=tq, tk=tk, dh=dh, n_heads=n_heads)


# ---------------------------------------------------------------------------
# Wrapper
# ---------------------------------------------------------------------------
def self_attention(x, w_in, b_in, w_out, b_out, *, n_heads, causal=False,
                   block_q=512, block_kv=512, block_s=512, compute_dtype=None):
    """SelfAttention forward.

    x: (B, S, D).  w_in: (D, 3D) [in, out]; b_in: (3D,); w_out: (D, D);
    b_out: (D,).  block_* are sweep parameters per TPU generation (they clamp
    to S for small shapes); compute_dtype=jnp.bfloat16 halves the q/k/v HBM
    round trip and doubles MXU rate (softmax stats / accumulators stay f32).
    """
    B, S, D = x.shape
    H = n_heads
    assert D % H == 0, "d_embed must be divisible by n_heads"
    dh = D // H
    scale = 1.0 / math.sqrt(dh)
    if compute_dtype is None:
        compute_dtype = x.dtype

    # One-time wrapper-side weight plumbing: fold the softmax scale into the
    # q columns of the fused in_proj weight/bias (torch chunk order: q, k, v).
    col_scale = jnp.concatenate(
        [jnp.full((D,), scale, jnp.float32), jnp.ones((2 * D,), jnp.float32)])
    w_qkv = (w_in.astype(jnp.float32) * col_scale[None, :]).astype(compute_dtype)
    b_qkv = (b_in.astype(jnp.float32) * col_scale).reshape(1, 3 * D)   # f32
    w_o = w_out.astype(compute_dtype)
    b_o = b_out.astype(jnp.float32).reshape(1, D)
    x_c = x.astype(compute_dtype)

    ts = _pick_tile(S, block_s)
    tq = _pick_tile(S, block_q)
    tk = _pick_tile(S, block_kv)
    n_s, n_q, n_kv = S // ts, S // tq, S // tk
    vmem_limit = _vmem_limit_bytes()

    # ---- Kernel 1: fused QKV projection ------------------------------------
    qkv_sds = jax.ShapeDtypeStruct((B, S, D), compute_dtype)
    q, k, v = pl.pallas_call(
        _qkv_proj_kernel,
        out_shape=(qkv_sds, qkv_sds, qkv_sds),
        grid_spec=pltpu.PrefetchScalarGridSpec(
            num_scalar_prefetch=0,
            grid=(B, n_s),
            in_specs=[
                pl.BlockSpec((1, ts, D), lambda b, s: (b, s, 0)),      # x
                _resident_spec((D, 3 * D), lambda b, s: (0, 0)),       # W_qkv
                _resident_spec((1, 3 * D), lambda b, s: (0, 0)),       # b_qkv
            ],
            out_specs=(
                pl.BlockSpec((1, ts, D), lambda b, s: (b, s, 0)),      # q
                pl.BlockSpec((1, ts, D), lambda b, s: (b, s, 0)),      # k
                pl.BlockSpec((1, ts, D), lambda b, s: (b, s, 0)),      # v
            ),
        ),
        compiler_params=pltpu.CompilerParams(
            dimension_semantics=("parallel", "parallel"),
            vmem_limit_bytes=vmem_limit),
    )(x_c, w_qkv, b_qkv)

    # ---- Kernel 2: flash attention + fused out_proj -------------------------
    scratch = [
        pltpu.VMEM((tq, H), jnp.float32),   # running max, one column per head
        pltpu.VMEM((tq, H), jnp.float32),   # running sum, one column per head
        pltpu.VMEM((tq, D), jnp.float32),   # weighted-V accumulator (heads packed)
    ]
    out_shape = jax.ShapeDtypeStruct((B, S, D), x.dtype)

    if not causal:
        return pl.pallas_call(
            functools.partial(_flash_attn_kernel, tq=tq, tk=tk, dh=dh, n_heads=H),
            out_shape=out_shape,
            grid_spec=pltpu.PrefetchScalarGridSpec(
                num_scalar_prefetch=0,
                grid=(B, n_q, n_kv),
                in_specs=[
                    pl.BlockSpec((1, tq, D), lambda b, i, j: (b, i, 0)),  # q
                    pl.BlockSpec((1, tk, D), lambda b, i, j: (b, j, 0)),  # k
                    pl.BlockSpec((1, tk, D), lambda b, i, j: (b, j, 0)),  # v
                    _resident_spec((D, D), lambda b, i, j: (0, 0)),       # W_out
                    _resident_spec((1, D), lambda b, i, j: (0, 0)),       # b_out
                ],
                out_specs=pl.BlockSpec((1, tq, D), lambda b, i, j: (b, i, 0)),
                scratch_shapes=scratch,
            ),
            compiler_params=pltpu.CompilerParams(
                dimension_semantics=("parallel", "parallel", "arbitrary"),
                vmem_limit_bytes=vmem_limit),
        )(q, k, v, w_o, b_o)

    # Causal: flatten (qi, kv) into a lower-triangular step list driven by
    # scalar-prefetch tables, so fully-masked kv tiles pay neither the grid
    # step nor the K/V DMA.
    qi_l, kv_l, last_l = [], [], []
    for i in range(n_q):
        j_hi = ((i + 1) * tq - 1) // tk     # last kv tile intersecting row tile i
        for j in range(j_hi + 1):
            qi_l.append(i)
            kv_l.append(j)
            last_l.append(1 if j == j_hi else 0)
    qi_tab = jnp.asarray(qi_l, dtype=jnp.int32)
    kv_tab = jnp.asarray(kv_l, dtype=jnp.int32)
    last_tab = jnp.asarray(last_l, dtype=jnp.int32)

    # TODO(synk): causal parallelism is batch-only; for tiny B on v7x (2 TCs)
    # un-fuse the out_proj and move q-tiles back to a parallel grid axis.
    return pl.pallas_call(
        functools.partial(_flash_attn_kernel_causal, tq=tq, tk=tk, dh=dh,
                          n_heads=H),
        out_shape=out_shape,
        grid_spec=pltpu.PrefetchScalarGridSpec(
            num_scalar_prefetch=3,
            grid=(B, len(qi_l)),
            in_specs=[
                pl.BlockSpec((1, tq, D), lambda b, t, qi, kv, lt: (b, qi[t], 0)),
                pl.BlockSpec((1, tk, D), lambda b, t, qi, kv, lt: (b, kv[t], 0)),
                pl.BlockSpec((1, tk, D), lambda b, t, qi, kv, lt: (b, kv[t], 0)),
                _resident_spec((D, D), lambda b, t, qi, kv, lt: (0, 0)),
                _resident_spec((1, D), lambda b, t, qi, kv, lt: (0, 0)),
            ],
            out_specs=pl.BlockSpec((1, tq, D),
                                   lambda b, t, qi, kv, lt: (b, qi[t], 0)),
            scratch_shapes=scratch,
        ),
        compiler_params=pltpu.CompilerParams(
            dimension_semantics=("parallel", "arbitrary"),
            vmem_limit_bytes=vmem_limit),
    )(qi_tab, kv_tab, last_tab, q, k, v, w_o, b_o)


# ---------------------------------------------------------------------------
# Pure-JAX reference mirroring the PyTorch forward
# ---------------------------------------------------------------------------
def _reference(x, w_in, b_in, w_out, b_out, n_heads, causal):
    B, S, D = x.shape
    dh = D // n_heads
    qkv = x @ w_in + b_in
    q, k, v = jnp.split(qkv, 3, axis=-1)
    q = q.reshape(B, S, n_heads, dh).transpose(0, 2, 1, 3)
    k = k.reshape(B, S, n_heads, dh).transpose(0, 2, 1, 3)
    v = v.reshape(B, S, n_heads, dh).transpose(0, 2, 1, 3)
    w = q @ jnp.swapaxes(k, -1, -2)
    if causal:
        mask = jnp.triu(jnp.ones((S, S), dtype=bool), 1)
        w = jnp.where(mask, -jnp.inf, w)
    w = w / math.sqrt(dh)
    w = jax.nn.softmax(w, axis=-1)
    out = w @ v
    out = out.transpose(0, 2, 1, 3).reshape(B, S, D)
    return out @ w_out + b_out


if __name__ == "__main__":
    # Small shapes consistent with the module's forward.
    batch, seq, d_embed, n_heads = 2, 8, 32, 4

    key = jax.random.PRNGKey(0)
    kx, k1, k2, k3, k4 = jax.random.split(key, 5)

    x = jax.random.normal(kx, (batch, seq, d_embed), dtype=jnp.float32)

    bound = 1.0 / math.sqrt(d_embed)
    w_in = jax.random.uniform(k1, (d_embed, 3 * d_embed), minval=-bound,
                              maxval=bound, dtype=jnp.float32)
    b_in = jax.random.uniform(k2, (3 * d_embed,), minval=-bound, maxval=bound,
                              dtype=jnp.float32)
    w_out = jax.random.uniform(k3, (d_embed, d_embed), minval=-bound,
                               maxval=bound, dtype=jnp.float32)
    b_out = jax.random.uniform(k4, (d_embed,), minval=-bound, maxval=bound,
                               dtype=jnp.float32)

    for causal in (False, True):
        fn = jax.jit(functools.partial(self_attention, n_heads=n_heads,
                                       causal=causal))
        y = jax.block_until_ready(fn(x, w_in, b_in, w_out, b_out))
        y_ref = _reference(x, w_in, b_in, w_out, b_out, n_heads, causal)
        assert y.shape == (batch, seq, d_embed)
        # Tolerance covers the approximate EUP reciprocal in the softmax
        # normalization and the reference's default matmul precision; all
        # kernel matmuls / stats accumulate in f32.
        err = float(jnp.max(jnp.abs(y - y_ref)))
        assert err < 2e-2, f"mismatch (causal={causal}), max abs err {err}"

    print("KERNEL_OK")
</pallas_src>

<mosaic_0001>
module attributes {stable_mosaic.version = 11 : i64} {
  func.func @_flash_attn_kernel(%arg0: i32, %arg1: i32, %arg2: i32, %arg3: memref<1x8x32xf32, #tpu.memory_space<vmem>>, %arg4: memref<1x8x32xf32, #tpu.memory_space<vmem>>, %arg5: memref<1x8x32xf32, #tpu.memory_space<vmem>>, %arg6: memref<32x32xf32, #tpu.memory_space<vmem>>, %arg7: memref<1x32xf32, #tpu.memory_space<vmem>>, %arg8: memref<1x8x32xf32, #tpu.memory_space<vmem>>, %arg9: memref<8x4xf32, #tpu.memory_space<vmem>>, %arg10: memref<8x4xf32, #tpu.memory_space<vmem>>, %arg11: memref<8x32xf32, #tpu.memory_space<vmem>>) attributes {dimension_semantics = [#tpu.dimension_semantics<parallel>, #tpu.dimension_semantics<parallel>, #tpu.dimension_semantics<arbitrary>], iteration_bounds = array<i64: 2, 1, 1>, scalar_prefetch = 0 : i64, scratch_operands = 3 : i64, tpu.core_type = #tpu.core_type<tc>, window_params = [{transform_indices = @transform_0, window_bounds = array<i64: 1, 8, 32>}, {transform_indices = @transform_1, window_bounds = array<i64: 1, 8, 32>}, {transform_indices = @transform_2, window_bounds = array<i64: 1, 8, 32>}, {pipeline_mode = #tpu.pipeline_mode<synchronous>, transform_indices = @transform_3, window_bounds = array<i64: 32, 32>}, {pipeline_mode = #tpu.pipeline_mode<synchronous>, transform_indices = @transform_4, window_bounds = array<i64: 1, 32>}, {transform_indices = @transform_5, window_bounds = array<i64: 1, 8, 32>}]} {
    %c0_i32 = arith.constant 0 : i32
    %0 = arith.cmpi eq, %arg2, %c0_i32 : i32
    %c0_i32_0 = arith.constant 0 : i32
    %1 = arith.cmpi eq, %arg2, %c0_i32_0 : i32
    %2 = arith.extui %1 : i1 to i32
    %c0_i32_1 = arith.constant 0 : i32
    %3 = arith.cmpi ne, %2, %c0_i32_1 : i32
    scf.if %3 {
      %cst_68 = arith.constant 0xFF800000 : f32
      %116 = vector.broadcast %cst_68 : f32 to vector<8x4xf32>
      %c0_69 = arith.constant 0 : index
      %c0_70 = arith.constant 0 : index
      %117 = vector.load %arg9[%c0_69, %c0_70] : memref<8x4xf32, #tpu.memory_space<vmem>>, vector<8x4xf32>
      tpu.vector_store %arg9[%c0_69, %c0_70], %116 {strides = array<i32>} : memref<8x4xf32, #tpu.memory_space<vmem>>, vector<8x4xf32>,
      %cst_71 = arith.constant 0.000000e+00 : f32
      %118 = vector.broadcast %cst_71 : f32 to vector<8x4xf32>
      %c0_72 = arith.constant 0 : index
      %c0_73 = arith.constant 0 : index
      %119 = vector.load %arg10[%c0_72, %c0_73] : memref<8x4xf32, #tpu.memory_space<vmem>>, vector<8x4xf32>
      tpu.vector_store %arg10[%c0_72, %c0_73], %118 {strides = array<i32>} : memref<8x4xf32, #tpu.memory_space<vmem>>, vector<8x4xf32>,
      %cst_74 = arith.constant 0.000000e+00 : f32
      %120 = vector.broadcast %cst_74 : f32 to vector<8x32xf32>
      %c0_75 = arith.constant 0 : index
      %c0_76 = arith.constant 0 : index
      %121 = vector.load %arg11[%c0_75, %c0_76] : memref<8x32xf32, #tpu.memory_space<vmem>>, vector<8x32xf32>
      tpu.vector_store %arg11[%c0_75, %c0_76], %120 {strides = array<i32>} : memref<8x32xf32, #tpu.memory_space<vmem>>, vector<8x32xf32>,
    } else {
    }
    %c0 = arith.constant 0 : index
    %c0_2 = arith.constant 0 : index
    %c0_3 = arith.constant 0 : index
    %4 = vector.load %arg3[%c0, %c0_2, %c0_3] : memref<1x8x32xf32, #tpu.memory_space<vmem>>, vector<1x8x32xf32>
    %5 = vector.shape_cast %4 : vector<1x8x32xf32> to vector<8x32xf32>
    %c0_4 = arith.constant 0 : index
    %c0_5 = arith.constant 0 : index
    %c0_6 = arith.constant 0 : index
    %6 = vector.load %arg4[%c0_4, %c0_5, %c0_6] : memref<1x8x32xf32, #tpu.memory_space<vmem>>, vector<1x8x32xf32>
    %7 = vector.shape_cast %6 : vector<1x8x32xf32> to vector<8x32xf32>
    %c0_7 = arith.constant 0 : index
    %c0_8 = arith.constant 0 : index
    %c0_9 = arith.constant 0 : index
    %8 = vector.load %arg5[%c0_7, %c0_8, %c0_9] : memref<1x8x32xf32, #tpu.memory_space<vmem>>, vector<1x8x32xf32>
    %9 = vector.shape_cast %8 : vector<1x8x32xf32> to vector<8x32xf32>
    %10 = vector.extract_strided_slice %5 {offsets = [0, 0], sizes = [8, 8], strides = [1, 1]} : vector<8x32xf32> to vector<8x8xf32>
    %11 = vector.extract_strided_slice %7 {offsets = [0, 0], sizes = [8, 8], strides = [1, 1]} : vector<8x32xf32> to vector<8x8xf32>
    %cst = arith.constant dense<0.000000e+00> : vector<8x8xf32>
    %12 = tpu.matmul %10, %11, %cst {dimension_numbers = #tpu.dot_dimension_numbers<[1], [1], [0], [0], [0, 0, 1, 0], [], []>} : vector<8x8xf32>, vector<8x8xf32>, vector<8x8xf32> -> vector<8x8xf32>
    %c0_10 = arith.constant 0 : index
    %c0_11 = arith.constant 0 : index
    %13 = vector.load %arg9[%c0_10, %c0_11] : memref<8x4xf32, #tpu.memory_space<vmem>>, vector<8x1xf32>
    %cst_12 = arith.constant dense<0xFF800000> : vector<8xf32>
    %14 = vector.multi_reduction <maximumf>, %12, %cst_12 [1] : vector<8x8xf32> to vector<8xf32>
    %15 = vector.shape_cast %14 : vector<8xf32> to vector<8x1xf32>
    %16 = arith.maximumf %13, %15 : vector<8x1xf32>
    %17 = arith.subf %13, %16 : vector<8x1xf32>
    %18 = math.exp %17 : vector<8x1xf32>
    %19 = vector.broadcast %16 : vector<8x1xf32> to vector<8x8xf32>
    %20 = arith.subf %12, %19 : vector<8x8xf32>
    %21 = math.exp %20 : vector<8x8xf32>
    %c0_13 = arith.constant 0 : index
    %c0_14 = arith.constant 0 : index
    %22 = vector.load %arg10[%c0_13, %c0_14] : memref<8x4xf32, #tpu.memory_space<vmem>>, vector<8x1xf32>
    %23 = arith.mulf %18, %22 : vector<8x1xf32>
    %cst_15 = arith.constant dense<0.000000e+00> : vector<8xf32>
    %24 = vector.multi_reduction <add>, %21, %cst_15 [1] : vector<8x8xf32> to vector<8xf32>
    %25 = vector.shape_cast %24 : vector<8xf32> to vector<8x1xf32>
    %26 = arith.addf %23, %25 : vector<8x1xf32>
    %c0_16 = arith.constant 0 : index
    %c0_17 = arith.constant 0 : index
    %27 = vector.load %arg10[%c0_16, %c0_17] : memref<8x4xf32, #tpu.memory_space<vmem>>, vector<8x1xf32>
    tpu.vector_store %arg10[%c0_16, %c0_17], %26 {strides = array<i32>} : memref<8x4xf32, #tpu.memory_space<vmem>>, vector<8x1xf32>,
    %c0_18 = arith.constant 0 : index
    %c0_19 = arith.constant 0 : index
    %28 = vector.load %arg11[%c0_18, %c0_19] : memref<8x32xf32, #tpu.memory_space<vmem>>, vector<8x8xf32>
    %29 = vector.broadcast %18 : vector<8x1xf32> to vector<8x8xf32>
    %30 = arith.mulf %29, %28 : vector<8x8xf32>
    %31 = vector.extract_strided_slice %9 {offsets = [0, 0], sizes = [8, 8], strides = [1, 1]} : vector<8x32xf32> to vector<8x8xf32>
    %cst_20 = arith.constant dense<0.000000e+00> : vector<8x8xf32>
    %32 = tpu.matmul %21, %31, %cst_20 {dimension_numbers = #tpu.dot_dimension_numbers<[1], [0], [0], [1], [0, 0, 1, 1], [], []>} : vector<8x8xf32>, vector<8x8xf32>, vector<8x8xf32> -> vector<8x8xf32>
    %33 = arith.addf %30, %32 : vector<8x8xf32>
    %c0_21 = arith.constant 0 : index
    %c0_22 = arith.constant 0 : index
    %34 = vector.load %arg11[%c0_21, %c0_22] : memref<8x32xf32, #tpu.memory_space<vmem>>, vector<8x8xf32>
    tpu.vector_store %arg11[%c0_21, %c0_22], %33 {strides = array<i32>} : memref<8x32xf32, #tpu.memory_space<vmem>>, vector<8x8xf32>,
    %c0_23 = arith.constant 0 : index
    %c0_24 = arith.constant 0 : index
    %35 = vector.load %arg9[%c0_23, %c0_24] : memref<8x4xf32, #tpu.memory_space<vmem>>, vector<8x1xf32>
    tpu.vector_store %arg9[%c0_23, %c0_24], %16 {strides = array<i32>} : memref<8x4xf32, #tpu.memory_space<vmem>>, vector<8x1xf32>,
    %36 = vector.extract_strided_slice %5 {offsets = [0, 8], sizes = [8, 8], strides = [1, 1]} : vector<8x32xf32> to vector<8x8xf32>
    %37 = vector.extract_strided_slice %7 {offsets = [0, 8], sizes = [8, 8], strides = [1, 1]} : vector<8x32xf32> to vector<8x8xf32>
    %cst_25 = arith.constant dense<0.000000e+00> : vector<8x8xf32>
    %38 = tpu.matmul %36, %37, %cst_25 {dimension_numbers = #tpu.dot_dimension_numbers<[1], [1], [0], [0], [0, 0, 1, 0], [], []>} : vector<8x8xf32>, vector<8x8xf32>, vector<8x8xf32> -> vector<8x8xf32>
    %c0_26 = arith.constant 0 : index
    %c1 = arith.constant 1 : index
    %39 = vector.load %arg9[%c0_26, %c1] : memref<8x4xf32, #tpu.memory_space<vmem>>, vector<8x1xf32>
    %cst_27 = arith.constant dense<0xFF800000> : vector<8xf32>
    %40 = vector.multi_reduction <maximumf>, %38, %cst_27 [1] : vector<8x8xf32> to vector<8xf32>
    %41 = vector.shape_cast %40 : vector<8xf32> to vector<8x1xf32>
    %42 = arith.maximumf %39, %41 : vector<8x1xf32>
    %43 = arith.subf %39, %42 : vector<8x1xf32>
    %44 = math.exp %43 : vector<8x1xf32>
    %45 = vector.broadcast %42 : vector<8x1xf32> to vector<8x8xf32>
    %46 = arith.subf %38, %45 : vector<8x8xf32>
    %47 = math.exp %46 : vector<8x8xf32>
    %c0_28 = arith.constant 0 : index
    %c1_29 = arith.constant 1 : index
    %48 = vector.load %arg10[%c0_28, %c1_29] : memref<8x4xf32, #tpu.memory_space<vmem>>, vector<8x1xf32>
    %49 = arith.mulf %44, %48 : vector<8x1xf32>
    %cst_30 = arith.constant dense<0.000000e+00> : vector<8xf32>
    %50 = vector.multi_reduction <add>, %47, %cst_30 [1] : vector<8x8xf32> to vector<8xf32>
    %51 = vector.shape_cast %50 : vector<8xf32> to vector<8x1xf32>
    %52 = arith.addf %49, %51 : vector<8x1xf32>
    %c0_31 = arith.constant 0 : index
    %c1_32 = arith.constant 1 : index
    %53 = vector.load %arg10[%c0_31, %c1_32] : memref<8x4xf32, #tpu.memory_space<vmem>>, vector<8x1xf32>
    tpu.vector_store %arg10[%c0_31, %c1_32], %52 {strides = array<i32>} : memref<8x4xf32, #tpu.memory_space<vmem>>, vector<8x1xf32>,
    %c0_33 = arith.constant 0 : index
    %c8 = arith.constant 8 : index
    %54 = vector.load %arg11[%c0_33, %c8] : memref<8x32xf32, #tpu.memory_space<vmem>>, vector<8x8xf32>
    %55 = vector.broadcast %44 : vector<8x1xf32> to vector<8x8xf32>
    %56 = arith.mulf %55, %54 : vector<8x8xf32>
    %57 = vector.extract_strided_slice %9 {offsets = [0, 8], sizes = [8, 8], strides = [1, 1]} : vector<8x32xf32> to vector<8x8xf32>
    %cst_34 = arith.constant dense<0.000000e+00> : vector<8x8xf32>
    %58 = tpu.matmul %47, %57, %cst_34 {dimension_numbers = #tpu.dot_dimension_numbers<[1], [0], [0], [1], [0, 0, 1, 1], [], []>} : vector<8x8xf32>, vector<8x8xf32>, vector<8x8xf32> -> vector<8x8xf32>
    %59 = arith.addf %56, %58 : vector<8x8xf32>
    %c0_35 = arith.constant 0 : index
    %c8_36 = arith.constant 8 : index
    %60 = vector.load %arg11[%c0_35, %c8_36] : memref<8x32xf32, #tpu.memory_space<vmem>>, vector<8x8xf32>
    tpu.vector_store %arg11[%c0_35, %c8_36], %59 {strides = array<i32>} : memref<8x32xf32, #tpu.memory_space<vmem>>, vector<8x8xf32>,
    %c0_37 = arith.constant 0 : index
    %c1_38 = arith.constant 1 : index
    %61 = vector.load %arg9[%c0_37, %c1_38] : memref<8x4xf32, #tpu.memory_space<vmem>>, vector<8x1xf32>
    tpu.vector_store %arg9[%c0_37, %c1_38], %42 {strides = array<i32>} : memref<8x4xf32, #tpu.memory_space<vmem>>, vector<8x1xf32>,
    %62 = vector.extract_strided_slice %5 {offsets = [0, 16], sizes = [8, 8], strides = [1, 1]} : vector<8x32xf32> to vector<8x8xf32>
    %63 = vector.extract_strided_slice %7 {offsets = [0, 16], sizes = [8, 8], strides = [1, 1]} : vector<8x32xf32> to vector<8x8xf32>
    %cst_39 = arith.constant dense<0.000000e+00> : vector<8x8xf32>
    %64 = tpu.matmul %62, %63, %cst_39 {dimension_numbers = #tpu.dot_dimension_numbers<[1], [1], [0], [0], [0, 0, 1, 0], [], []>} : vector<8x8xf32>, vector<8x8xf32>, vector<8x8xf32> -> vector<8x8xf32>
    %c0_40 = arith.constant 0 : index
    %c2 = arith.constant 2 : index
    %65 = vector.load %arg9[%c0_40, %c2] : memref<8x4xf32, #tpu.memory_space<vmem>>, vector<8x1xf32>
    %cst_41 = arith.constant dense<0xFF800000> : vector<8xf32>
    %66 = vector.multi_reduction <maximumf>, %64, %cst_41 [1] : vector<8x8xf32> to vector<8xf32>
    %67 = vector.shape_cast %66 : vector<8xf32> to vector<8x1xf32>
    %68 = arith.maximumf %65, %67 : vector<8x1xf32>
    %69 = arith.subf %65, %68 : vector<8x1xf32>
    %70 = math.exp %69 : vector<8x1xf32>
    %71 = vector.broadcast %68 : vector<8x1xf32> to vector<8x8xf32>
    %72 = arith.subf %64, %71 : vector<8x8xf32>
    %73 = math.exp %72 : vector<8x8xf32>
    %c0_42 = arith.constant 0 : index
    %c2_43 = arith.constant 2 : index
    %74 = vector.load %arg10[%c0_42, %c2_43] : memref<8x4xf32, #tpu.memory_space<vmem>>, vector<8x1xf32>
    %75 = arith.mulf %70, %74 : vector<8x1xf32>
    %cst_44 = arith.constant dense<0.000000e+00> : vector<8xf32>
    %76 = vector.multi_reduction <add>, %73, %cst_44 [1] : vector<8x8xf32> to vector<8xf32>
    %77 = vector.shape_cast %76 : vector<8xf32> to vector<8x1xf32>
    %78 = arith.addf %75, %77 : vector<8x1xf32>
    %c0_45 = arith.constant 0 : index
    %c2_46 = arith.constant 2 : index
    %79 = vector.load %arg10[%c0_45, %c2_46] : memref<8x4xf32, #tpu.memory_space<vmem>>, vector<8x1xf32>
    tpu.vector_store %arg10[%c0_45, %c2_46], %78 {strides = array<i32>} : memref<8x4xf32, #tpu.memory_space<vmem>>, vector<8x1xf32>,
    %c0_47 = arith.constant 0 : index
    %c16 = arith.constant 16 : index
    %80 = vector.load %arg11[%c0_47, %c16] : memref<8x32xf32, #tpu.memory_space<vmem>>, vector<8x8xf32>
    %81 = vector.broadcast %70 : vector<8x1xf32> to vector<8x8xf32>
    %82 = arith.mulf %81, %80 : vector<8x8xf32>
    %83 = vector.extract_strided_slice %9 {offsets = [0, 16], sizes = [8, 8], strides = [1, 1]} : vector<8x32xf32> to vector<8x8xf32>
    %cst_48 = arith.constant dense<0.000000e+00> : vector<8x8xf32>
    %84 = tpu.matmul %73, %83, %cst_48 {dimension_numbers = #tpu.dot_dimension_numbers<[1], [0], [0], [1], [0, 0, 1, 1], [], []>} : vector<8x8xf32>, vector<8x8xf32>, vector<8x8xf32> -> vector<8x8xf32>
    %85 = arith.addf %82, %84 : vector<8x8xf32>
    %c0_49 = arith.constant 0 : index
    %c16_50 = arith.constant 16 : index
    %86 = vector.load %arg11[%c0_49, %c16_50] : memref<8x32xf32, #tpu.memory_space<vmem>>, vector<8x8xf32>
    tpu.vector_store %arg11[%c0_49, %c16_50], %85 {strides = array<i32>} : memref<8x32xf32, #tpu.memory_space<vmem>>, vector<8x8xf32>,
    %c0_51 = arith.constant 0 : index
    %c2_52 = arith.constant 2 : index
    %87 = vector.load %arg9[%c0_51, %c2_52] : memref<8x4xf32, #tpu.memory_space<vmem>>, vector<8x1xf32>
    tpu.vector_store %arg9[%c0_51, %c2_52], %68 {strides = array<i32>} : memref<8x4xf32, #tpu.memory_space<vmem>>, vector<8x1xf32>,
    %88 = vector.extract_strided_slice %5 {offsets = [0, 24], sizes = [8, 8], strides = [1, 1]} : vector<8x32xf32> to vector<8x8xf32>
    %89 = vector.extract_strided_slice %7 {offsets = [0, 24], sizes = [8, 8], strides = [1, 1]} : vector<8x32xf32> to vector<8x8xf32>
    %cst_53 = arith.constant dense<0.000000e+00> : vector<8x8xf32>
    %90 = tpu.matmul %88, %89, %cst_53 {dimension_numbers = #tpu.dot_dimension_numbers<[1], [1], [0], [0], [0, 0, 1, 0], [], []>} : vector<8x8xf32>, vector<8x8xf32>, vector<8x8xf32> -> vector<8x8xf32>
    %c0_54 = arith.constant 0 : index
    %c3 = arith.constant 3 : index
    %91 = vector.load %arg9[%c0_54, %c3] : memref<8x4xf32, #tpu.memory_space<vmem>>, vector<8x1xf32>
    %cst_55 = arith.constant dense<0xFF800000> : vector<8xf32>
    %92 = vector.multi_reduction <maximumf>, %90, %cst_55 [1] : vector<8x8xf32> to vector<8xf32>
    %93 = vector.shape_cast %92 : vector<8xf32> to vector<8x1xf32>
    %94 = arith.maximumf %91, %93 : vector<8x1xf32>
    %95 = arith.subf %91, %94 : vector<8x1xf32>
    %96 = math.exp %95 : vector<8x1xf32>
    %97 = vector.broadcast %94 : vector<8x1xf32> to vector<8x8xf32>
    %98 = arith.subf %90, %97 : vector<8x8xf32>
    %99 = math.exp %98 : vector<8x8xf32>
    %c0_56 = arith.constant 0 : index
    %c3_57 = arith.constant 3 : index
    %100 = vector.load %arg10[%c0_56, %c3_57] : memref<8x4xf32, #tpu.memory_space<vmem>>, vector<8x1xf32>
    %101 = arith.mulf %96, %100 : vector<8x1xf32>
    %cst_58 = arith.constant dense<0.000000e+00> : vector<8xf32>
    %102 = vector.multi_reduction <add>, %99, %cst_58 [1] : vector<8x8xf32> to vector<8xf32>
    %103 = vector.shape_cast %102 : vector<8xf32> to vector<8x1xf32>
    %104 = arith.addf %101, %103 : vector<8x1xf32>
    %c0_59 = arith.constant 0 : index
    %c3_60 = arith.constant 3 : index
    %105 = vector.load %arg10[%c0_59, %c3_60] : memref<8x4xf32, #tpu.memory_space<vmem>>, vector<8x1xf32>
    tpu.vector_store %arg10[%c0_59, %c3_60], %104 {strides = array<i32>} : memref<8x4xf32, #tpu.memory_space<vmem>>, vector<8x1xf32>,
    %c0_61 = arith.constant 0 : index
    %c24 = arith.constant 24 : index
    %106 = vector.load %arg11[%c0_61, %c24] : memref<8x32xf32, #tpu.memory_space<vmem>>, vector<8x8xf32>
    %107 = vector.broadcast %96 : vector<8x1xf32> to vector<8x8xf32>
    %108 = arith.mulf %107, %106 : vector<8x8xf32>
    %109 = vector.extract_strided_slice %9 {offsets = [0, 24], sizes = [8, 8], strides = [1, 1]} : vector<8x32xf32> to vector<8x8xf32>
    %cst_62 = arith.constant dense<0.000000e+00> : vector<8x8xf32>
    %110 = tpu.matmul %99, %109, %cst_62 {dimension_numbers = #tpu.dot_dimension_numbers<[1], [0], [0], [1], [0, 0, 1, 1], [], []>} : vector<8x8xf32>, vector<8x8xf32>, vector<8x8xf32> -> vector<8x8xf32>
    %111 = arith.addf %108, %110 : vector<8x8xf32>
    %c0_63 = arith.constant 0 : index
    %c24_64 = arith.constant 24 : index
    %112 = vector.load %arg11[%c0_63, %c24_64] : memref<8x32xf32, #tpu.memory_space<vmem>>, vector<8x8xf32>
    tpu.vector_store %arg11[%c0_63, %c24_64], %111 {strides = array<i32>} : memref<8x32xf32, #tpu.memory_space<vmem>>, vector<8x8xf32>,
    %c0_65 = arith.constant 0 : index
    %c3_66 = arith.constant 3 : index
    %113 = vector.load %arg9[%c0_65, %c3_66] : memref<8x4xf32, #tpu.memory_space<vmem>>, vector<8x1xf32>
    tpu.vector_store %arg9[%c0_65, %c3_66], %94 {strides = array<i32>} : memref<8x4xf32, #tpu.memory_space<vmem>>, vector<8x1xf32>,
    %114 = arith.extui %0 : i1 to i32
    %c0_i32_67 = arith.constant 0 : i32
    %115 = arith.cmpi ne, %114, %c0_i32_67 : i32
    scf.if %115 {
      %c0_68 = arith.constant 0 : index
      %c0_69 = arith.constant 0 : index
      %116 = vector.load %arg10[%c0_68, %c0_69] : memref<8x4xf32, #tpu.memory_space<vmem>>, vector<8x1xf32>
      %117 = tpu.reciprocal %116 {approx = true} : vector<8x1xf32> -> vector<8x1xf32>
      %c0_70 = arith.constant 0 : index
      %c0_71 = arith.constant 0 : index
      %118 = vector.load %arg11[%c0_70, %c0_71] : memref<8x32xf32, #tpu.memory_space<vmem>>, vector<8x8xf32>
      %119 = vector.broadcast %117 : vector<8x1xf32> to vector<8x8xf32>
      %120 = arith.mulf %118, %119 : vector<8x8xf32>
      %c0_72 = arith.constant 0 : index
      %c0_73 = arith.constant 0 : index
      %121 = vector.load %arg11[%c0_72, %c0_73] : memref<8x32xf32, #tpu.memory_space<vmem>>, vector<8x8xf32>
      tpu.vector_store %arg11[%c0_72, %c0_73], %120 {strides = array<i32>} : memref<8x32xf32, #tpu.memory_space<vmem>>, vector<8x8xf32>,
      %c0_74 = arith.constant 0 : index
      %c1_75 = arith.constant 1 : index
      %122 = vector.load %arg10[%c0_74, %c1_75] : memref<8x4xf32, #tpu.memory_space<vmem>>, vector<8x1xf32>
      %123 = tpu.reciprocal %122 {approx = true} : vector<8x1xf32> -> vector<8x1xf32>
      %c0_76 = arith.constant 0 : index
      %c8_77 = arith.constant 8 : index
      %124 = vector.load %arg11[%c0_76, %c8_77] : memref<8x32xf32, #tpu.memory_space<vmem>>, vector<8x8xf32>
      %125 = vector.broadcast %123 : vector<8x1xf32> to vector<8x8xf32>
      %126 = arith.mulf %124, %125 : vector<8x8xf32>
      %c0_78 = arith.constant 0 : index
      %c8_79 = arith.constant 8 : index
      %127 = vector.load %arg11[%c0_78, %c8_79] : memref<8x32xf32, #tpu.memory_space<vmem>>, vector<8x8xf32>
      tpu.vector_store %arg11[%c0_78, %c8_79], %126 {strides = array<i32>} : memref<8x32xf32, #tpu.memory_space<vmem>>, vector<8x8xf32>,
      %c0_80 = arith.constant 0 : index
      %c2_81 = arith.constant 2 : index
      %128 = vector.load %arg10[%c0_80, %c2_81] : memref<8x4xf32, #tpu.memory_space<vmem>>, vector<8x1xf32>
      %129 = tpu.reciprocal %128 {approx = true} : vector<8x1xf32> -> vector<8x1xf32>
      %c0_82 = arith.constant 0 : index
      %c16_83 = arith.constant 16 : index
      %130 = vector.load %arg11[%c0_82, %c16_83] : memref<8x32xf32, #tpu.memory_space<vmem>>, vector<8x8xf32>
      %131 = vector.broadcast %129 : vector<8x1xf32> to vector<8x8xf32>
      %132 = arith.mulf %130, %131 : vector<8x8xf32>
      %c0_84 = arith.constant 0 : index
      %c16_85 = arith.constant 16 : index
      %133 = vector.load %arg11[%c0_84, %c16_85] : memref<8x32xf32, #tpu.memory_space<vmem>>, vector<8x8xf32>
      tpu.vector_store %arg11[%c0_84, %c16_85], %132 {strides = array<i32>} : memref<8x32xf32, #tpu.memory_space<vmem>>, vector<8x8xf32>,
      %c0_86 = arith.constant 0 : index
      %c3_87 = arith.constant 3 : index
      %134 = vector.load %arg10[%c0_86, %c3_87] : memref<8x4xf32, #tpu.memory_space<vmem>>, vector<8x1xf32>
      %135 = tpu.reciprocal %134 {approx = true} : vector<8x1xf32> -> vector<8x1xf32>
      %c0_88 = arith.constant 0 : index
      %c24_89 = arith.constant 24 : index
      %136 = vector.load %arg11[%c0_88, %c24_89] : memref<8x32xf32, #tpu.memory_space<vmem>>, vector<8x8xf32>
      %137 = vector.broadcast %135 : vector<8x1xf32> to vector<8x8xf32>
      %138 = arith.mulf %136, %137 : vector<8x8xf32>
      %c0_90 = arith.constant 0 : index
      %c24_91 = arith.constant 24 : index
      %139 = vector.load %arg11[%c0_90, %c24_91] : memref<8x32xf32, #tpu.memory_space<vmem>>, vector<8x8xf32>
      tpu.vector_store %arg11[%c0_90, %c24_91], %138 {strides = array<i32>} : memref<8x32xf32, #tpu.memory_space<vmem>>, vector<8x8xf32>,
      %c0_92 = arith.constant 0 : index
      %c0_93 = arith.constant 0 : index
      %140 = vector.load %arg11[%c0_92, %c0_93] : memref<8x32xf32, #tpu.memory_space<vmem>>, vector<8x32xf32>
      %c0_94 = arith.constant 0 : index
      %c0_95 = arith.constant 0 : index
      %141 = vector.load %arg6[%c0_94, %c0_95] : memref<32x32xf32, #tpu.memory_space<vmem>>, vector<32x32xf32>
      %cst_96 = arith.constant dense<0.000000e+00> : vector<8x32xf32>
      %142 = tpu.matmul %140, %141, %cst_96 {dimension_numbers = #tpu.dot_dimension_numbers<[1], [0], [0], [1], [0, 0, 1, 1], [], []>} : vector<8x32xf32>, vector<32x32xf32>, vector<8x32xf32> -> vector<8x32xf32>
      %c0_97 = arith.constant 0 : index
      %c0_98 = arith.constant 0 : index
      %143 = vector.load %arg7[%c0_97, %c0_98] : memref<1x32xf32, #tpu.memory_space<vmem>>, vector<1x32xf32>
      %144 = vector.broadcast %143 : vector<1x32xf32> to vector<8x32xf32>
      %145 = arith.addf %142, %144 : vector<8x32xf32>
      %c0_99 = arith.constant 0 : index
      %c0_100 = arith.constant 0 : index
      %c0_101 = arith.constant 0 : index
      %146 = vector.load %arg8[%c0_99, %c0_100, %c0_101] : memref<1x8x32xf32, #tpu.memory_space<vmem>>, vector<1x8x32xf32>
      %147 = vector.shape_cast %146 : vector<1x8x32xf32> to vector<8x32xf32>
      %148 = vector.shape_cast %145 : vector<8x32xf32> to vector<1x8x32xf32>
      tpu.vector_store %arg8[%c0_99, %c0_100, %c0_101], %148 {strides = array<i32>} : memref<1x8x32xf32, #tpu.memory_space<vmem>>, vector<1x8x32xf32>,
    } else {
    }
    return
  }
  func.func @transform_0(%arg0: i32, %arg1: i32, %arg2: i32) -> (i32, i32, i32) {
    %c0_i32 = arith.constant 0 : i32
    %c0_i32_0 = arith.constant 0 : i32
    return %arg0, %arg1, %c0_i32 : i32, i32, i32
  }
  func.func @transform_1(%arg0: i32, %arg1: i32, %arg2: i32) -> (i32, i32, i32) {
    %c0_i32 = arith.constant 0 : i32
    %c0_i32_0 = arith.constant 0 : i32
    return %arg0, %arg2, %c0_i32 : i32, i32, i32
  }
  func.func @transform_2(%arg0: i32, %arg1: i32, %arg2: i32) -> (i32, i32, i32) {
    %c0_i32 = arith.constant 0 : i32
    %c0_i32_0 = arith.constant 0 : i32
    return %arg0, %arg2, %c0_i32 : i32, i32, i32
  }
  func.func @transform_3(%arg0: i32, %arg1: i32, %arg2: i32) -> (i32, i32) {
    %c0_i32 = arith.constant 0 : i32
    %c0_i32_0 = arith.constant 0 : i32
    %c0_i32_1 = arith.constant 0 : i32
    return %c0_i32, %c0_i32_0 : i32, i32
  }
  func.func @transform_4(%arg0: i32, %arg1: i32, %arg2: i32) -> (i32, i32) {
    %c0_i32 = arith.constant 0 : i32
    %c0_i32_0 = arith.constant 0 : i32
    %c0_i32_1 = arith.constant 0 : i32
    return %c0_i32, %c0_i32_0 : i32, i32
  }
  func.func @transform_5(%arg0: i32, %arg1: i32, %arg2: i32) -> (i32, i32, i32) {
    %c0_i32 = arith.constant 0 : i32
    %c0_i32_0 = arith.constant 0 : i32
    return %arg0, %arg1, %c0_i32 : i32, i32, i32
  }
}

module attributes {stable_mosaic.version = 11 : i64} {
  func.func @_qkv_proj_kernel(%arg0: i32, %arg1: i32, %arg2: memref<1x8x32xf32, #tpu.memory_space<vmem>>, %arg3: memref<32x96xf32, #tpu.memory_space<vmem>>, %arg4: memref<1x96xf32, #tpu.memory_space<vmem>>, %arg5: memref<1x8x32xf32, #tpu.memory_space<vmem>>, %arg6: memref<1x8x32xf32, #tpu.memory_space<vmem>>, %arg7: memref<1x8x32xf32, #tpu.memory_space<vmem>>) attributes {dimension_semantics = [#tpu.dimension_semantics<parallel>, #tpu.dimension_semantics<parallel>], iteration_bounds = array<i64: 2, 1>, scalar_prefetch = 0 : i64, scratch_operands = 0 : i64, tpu.core_type = #tpu.core_type<tc>, window_params = [{transform_indices = @transform_0, window_bounds = array<i64: 1, 8, 32>}, {pipeline_mode = #tpu.pipeline_mode<synchronous>, transform_indices = @transform_1, window_bounds = array<i64: 32, 96>}, {pipeline_mode = #tpu.pipeline_mode<synchronous>, transform_indices = @transform_2, window_bounds = array<i64: 1, 96>}, {transform_indices = @transform_3, window_bounds = array<i64: 1, 8, 32>}, {transform_indices = @transform_4, window_bounds = array<i64: 1, 8, 32>}, {transform_indices = @transform_5, window_bounds = array<i64: 1, 8, 32>}]} {
    %c0 = arith.constant 0 : index
    %c0_0 = arith.constant 0 : index
    %c0_1 = arith.constant 0 : index
    %0 = vector.load %arg2[%c0, %c0_0, %c0_1] : memref<1x8x32xf32, #tpu.memory_space<vmem>>, vector<1x8x32xf32>
    %1 = vector.shape_cast %0 : vector<1x8x32xf32> to vector<8x32xf32>
    %c0_2 = arith.constant 0 : index
    %c0_3 = arith.constant 0 : index
    %2 = vector.load %arg3[%c0_2, %c0_3] : memref<32x96xf32, #tpu.memory_space<vmem>>, vector<32x96xf32>
    %cst = arith.constant dense<0.000000e+00> : vector<8x96xf32>
    %3 = tpu.matmul %1, %2, %cst {dimension_numbers = #tpu.dot_dimension_numbers<[1], [0], [0], [1], [0, 0, 1, 1], [], []>} : vector<8x32xf32>, vector<32x96xf32>, vector<8x96xf32> -> vector<8x96xf32>
    %c0_4 = arith.constant 0 : index
    %c0_5 = arith.constant 0 : index
    %4 = vector.load %arg4[%c0_4, %c0_5] : memref<1x96xf32, #tpu.memory_space<vmem>>, vector<1x96xf32>
    %5 = vector.broadcast %4 : vector<1x96xf32> to vector<8x96xf32>
    %6 = arith.addf %3, %5 : vector<8x96xf32>
    %7 = vector.extract_strided_slice %6 {offsets = [0, 0], sizes = [8, 32], strides = [1, 1]} : vector<8x96xf32> to vector<8x32xf32>
    %c0_6 = arith.constant 0 : index
    %c0_7 = arith.constant 0 : index
    %c0_8 = arith.constant 0 : index
    %8 = vector.load %arg5[%c0_6, %c0_7, %c0_8] : memref<1x8x32xf32, #tpu.memory_space<vmem>>, vector<1x8x32xf32>
    %9 = vector.shape_cast %8 : vector<1x8x32xf32> to vector<8x32xf32>
    %10 = vector.shape_cast %7 : vector<8x32xf32> to vector<1x8x32xf32>
    tpu.vector_store %arg5[%c0_6, %c0_7, %c0_8], %10 {strides = array<i32>} : memref<1x8x32xf32, #tpu.memory_space<vmem>>, vector<1x8x32xf32>,
    %11 = vector.extract_strided_slice %6 {offsets = [0, 32], sizes = [8, 32], strides = [1, 1]} : vector<8x96xf32> to vector<8x32xf32>
    %c0_9 = arith.constant 0 : index
    %c0_10 = arith.constant 0 : index
    %c0_11 = arith.constant 0 : index
    %12 = vector.load %arg6[%c0_9, %c0_10, %c0_11] : memref<1x8x32xf32, #tpu.memory_space<vmem>>, vector<1x8x32xf32>
    %13 = vector.shape_cast %12 : vector<1x8x32xf32> to vector<8x32xf32>
    %14 = vector.shape_cast %11 : vector<8x32xf32> to vector<1x8x32xf32>
    tpu.vector_store %arg6[%c0_9, %c0_10, %c0_11], %14 {strides = array<i32>} : memref<1x8x32xf32, #tpu.memory_space<vmem>>, vector<1x8x32xf32>,
    %15 = vector.extract_strided_slice %6 {offsets = [0, 64], sizes = [8, 32], strides = [1, 1]} : vector<8x96xf32> to vector<8x32xf32>
    %c0_12 = arith.constant 0 : index
    %c0_13 = arith.constant 0 : index
    %c0_14 = arith.constant 0 : index
    %16 = vector.load %arg7[%c0_12, %c0_13, %c0_14] : memref<1x8x32xf32, #tpu.memory_space<vmem>>, vector<1x8x32xf32>
    %17 = vector.shape_cast %16 : vector<1x8x32xf32> to vector<8x32xf32>
    %18 = vector.shape_cast %15 : vector<8x32xf32> to vector<1x8x32xf32>
    tpu.vector_store %arg7[%c0_12, %c0_13, %c0_14], %18 {strides = array<i32>} : memref<1x8x32xf32, #tpu.memory_space<vmem>>, vector<1x8x32xf32>,
    return
  }
  func.func @transform_0(%arg0: i32, %arg1: i32) -> (i32, i32, i32) {
    %c0_i32 = arith.constant 0 : i32
    %c0_i32_0 = arith.constant 0 : i32
    return %arg0, %arg1, %c0_i32 : i32, i32, i32
  }
  func.func @transform_1(%arg0: i32, %arg1: i32) -> (i32, i32) {
    %c0_i32 = arith.constant 0 : i32
    %c0_i32_0 = arith.constant 0 : i32
    %c0_i32_1 = arith.constant 0 : i32
    return %c0_i32, %c0_i32_0 : i32, i32
  }
  func.func @transform_2(%arg0: i32, %arg1: i32) -> (i32, i32) {
    %c0_i32 = arith.constant 0 : i32
    %c0_i32_0 = arith.constant 0 : i32
    %c0_i32_1 = arith.constant 0 : i32
    return %c0_i32, %c0_i32_0 : i32, i32
  }
  func.func @transform_3(%arg0: i32, %arg1: i32) -> (i32, i32, i32) {
    %c0_i32 = arith.constant 0 : i32
    %c0_i32_0 = arith.constant 0 : i32
    return %arg0, %arg1, %c0_i32 : i32, i32, i32
  }
  func.func @transform_4(%arg0: i32, %arg1: i32) -> (i32, i32, i32) {
    %c0_i32 = arith.constant 0 : i32
    %c0_i32_0 = arith.constant 0 : i32
    return %arg0, %arg1, %c0_i32 : i32, i32, i32
  }
  func.func @transform_5(%arg0: i32, %arg1: i32) -> (i32, i32, i32) {
    %c0_i32 = arith.constant 0 : i32
    %c0_i32_0 = arith.constant 0 : i32
    return %arg0, %arg1, %c0_i32 : i32, i32, i32
  }
}

</mosaic_0001>

<llo_original>
// kernel: self_attention.2
$region0: #{self_attention.2}
  #allocation0 [shape = 'u32[]', space=smem, size = 0x4, offset = 0x4, fixed_abs, tag = 'smem constant byte address 0x4 - core index']
  #allocation1 [shape = 'u32[72,128]{1,0:T(1,128)}', space=vmem, size = 0x9000, scoped, tag = 'internal scratch']
  %s0 = inlined_call_operand.vmem [shape: f32[2,8,32], index: 0, kind: input, shape index: {}]
  %s1 = inlined_call_operand.vmem [shape: f32[32,96], index: 1, kind: input, shape index: {}]
  %s2 = inlined_call_operand.vmem [shape: f32[1,96], index: 2, kind: input, shape index: {}]
  %s3 = inlined_call_operand.vmem [shape: f32[2,8,32], index: 3, kind: output, shape index: {0}]
  %s4 = inlined_call_operand.vmem [shape: f32[2,8,32], index: 4, kind: output, shape index: {1}]
  %s5 = inlined_call_operand.vmem [shape: f32[2,8,32], index: 5, kind: output, shape index: {2}]
  %6 = xla_tuple %s3, %s4, %s5
  %s7 = sld [smem:[#allocation0]]
  $region61: #{self_attention.2} parent=0
    _
  %s9 = ssub.s32 1, %s7
  %s10 = scalar_select 0, %s9, %s7
  loop: start=0, step=1, limit=4
  $region2: #{self_attention.2} parent=0 // loop_pre_header
    _
  $region3: #{self_attention.2} parent=0 // loop_header
    %s12 = sphi 0, %s16
    %p13 = scmp.ge.s32.totalorder %s12, 4
    %s19 = sphi 0, %s31
    %s20 = sphi 0, %s27
    %s21 = sphi 0, %s19
    %s22 = sphi 0, %s20
    %s23 = sphi 0, %s21
    %s24 = sphi 0, %s22
    %s36 = sphi 0, %s38
    %s39 = sphi 0, %s36
    %s40 = sphi 0, %s39
    %s56 = sphi 0, %s40
    %s60 = sphi 0, %s60
    %s62 = sphi 0, %s60
    %s63 = sphi 0, %s62
    %s77 = sphi 0, %s63
    %s81 = sphi 0, %s81
    %s83 = sphi 0, %s81
    %s84 = sphi 0, %s83
    %s98 = sphi 0, %s84
    %s106 = sphi 0, %s108
    %s109 = sphi 0, %s106
    %s110 = sphi 0, %s109
    %s126 = sphi 0, %s110
    %s134 = sphi 0, %s136
    %s137 = sphi 0, %s134
    %s138 = sphi 0, %s137
    %s154 = sphi 0, %s138
    %s162 = sphi 0, %s164
    %s165 = sphi 0, %s162
    %s166 = sphi 0, %s165
    %s182 = sphi 0, %s166
  $region4: #{self_attention.2} parent=0 // loop_header_branch
    %15 = sbr.rel (%p13) target = $region8
  $region5: #{self_attention.2} parent=0 // loop_body
    %s17 = ssub.s32 %s12, 1
    %s18 = ssub.s32 %s12, 2
    %s25 = sadd.s32 1, %s20
    %p26 = scmp.ge.s32.totalorder %s25, 1
    %s27 = scalar_select %p26, 0, %s25
    %s28 = sadd.s32 1, %s19
    %s29 = scalar_select %p26, %s28, %s19
    %p30 = scmp.ge.s32.totalorder %s29, 2
    %s31 = scalar_select %p30, 0, %s29
    %s32 = ssub.s32 %s19, %s31
    %s33 = ssub.s32 %s20, %s27
    %s34 = sor.u32 %s32, %s33
    %p35 = scmp.eq.s32.totalorder %s34, 0
    %s37 = sadd.s32 %s36, 1
    %s38 = scalar_select %p35, %s36, %s37
    %p41 = pneg %p35
    %p42 = scmp.eq.s32.totalorder %s12, 1
    %p43 = por %p41, %p42
    %p44 = scmp.ne.s32.totalorder %s36, %s39
    %p45 = scmp.eq.s32.totalorder %s12, 0
    %p46 = por %p44, %p45
    %p47 = scmp.ne.s32.totalorder %s36, %s39
    %p48 = scmp.eq.s32.totalorder %s17, 1
    %p49 = por %p47, %p48
    %p50 = scmp.ne.s32.totalorder %s39, %s40
    %p51 = scmp.eq.s32.totalorder %s17, 0
    %p52 = por %p50, %p51
    %p53 = scmp.ne.s32.totalorder %s39, %s40
    %p54 = scmp.eq.s32.totalorder %s18, 1
    %p55 = por %p53, %p54
    %p57 = scmp.ne.s32.totalorder %s40, %s56
    %p58 = scmp.eq.s32.totalorder %s18, 0
    %p59 = por %p57, %p58
    %s61 = sadd.s32 %s60, 1
    %p64 = scmp.eq.s32.totalorder %s12, 1
    %p65 = scmp.ne.s32.totalorder %s60, %s62
    %p66 = scmp.eq.s32.totalorder %s12, 0
    %p67 = por %p65, %p66
    %p68 = scmp.ne.s32.totalorder %s60, %s62
    %p69 = scmp.eq.s32.totalorder %s17, 1
    %p70 = por %p68, %p69
    %p71 = scmp.ne.s32.totalorder %s62, %s63
    %p72 = scmp.eq.s32.totalorder %s17, 0
    %p73 = por %p71, %p72
    %p74 = scmp.ne.s32.totalorder %s62, %s63
    %p75 = scmp.eq.s32.totalorder %s18, 1
    %p76 = por %p74, %p75
    %p78 = scmp.ne.s32.totalorder %s63, %s77
    %p79 = scmp.eq.s32.totalorder %s18, 0
    %p80 = por %p78, %p79
    %s82 = sadd.s32 %s81, 1
    %p85 = scmp.eq.s32.totalorder %s12, 1
    %p86 = scmp.ne.s32.totalorder %s81, %s83
    %p87 = scmp.eq.s32.totalorder %s12, 0
    %p88 = por %p86, %p87
    %p89 = scmp.ne.s32.totalorder %s81, %s83
    %p90 = scmp.eq.s32.totalorder %s17, 1
    %p91 = por %p89, %p90
    %p92 = scmp.ne.s32.totalorder %s83, %s84
    %p93 = scmp.eq.s32.totalorder %s17, 0
    %p94 = por %p92, %p93
    %p95 = scmp.ne.s32.totalorder %s83, %s84
    %p96 = scmp.eq.s32.totalorder %s18, 1
    %p97 = por %p95, %p96
    %p99 = scmp.ne.s32.totalorder %s84, %s98
    %p100 = scmp.eq.s32.totalorder %s18, 0
    %p101 = por %p99, %p100
    %s102 = ssub.s32 %s19, %s31
    %s103 = ssub.s32 %s20, %s27
    %s104 = sor.u32 %s102, %s103
    %p105 = scmp.eq.s32.totalorder %s104, 0
    %s107 = sadd.s32 %s106, 1
    %s108 = scalar_select %p105, %s106, %s107
    %p111 = pneg %p105
    %p112 = scmp.eq.s32.totalorder %s12, 1
    %p113 = por %p111, %p112
    %p114 = scmp.ne.s32.totalorder %s106, %s109
    %p115 = scmp.eq.s32.totalorder %s12, 0
    %p116 = por %p114, %p115
    %p117 = scmp.ne.s32.totalorder %s106, %s109
    %p118 = scmp.eq.s32.totalorder %s17, 1
    %p119 = por %p117, %p118
    %p120 = scmp.ne.s32.totalorder %s109, %s110
    %p121 = scmp.eq.s32.totalorder %s17, 0
    %p122 = por %p120, %p121
    %p123 = scmp.ne.s32.totalorder %s109, %s110
    %p124 = scmp.eq.s32.totalorder %s18, 1
    %p125 = por %p123, %p124
    %p127 = scmp.ne.s32.totalorder %s110, %s126
    %p128 = scmp.eq.s32.totalorder %s18, 0
    %p129 = por %p127, %p128
    %s130 = ssub.s32 %s19, %s31
    %s131 = ssub.s32 %s20, %s27
    %s132 = sor.u32 %s130, %s131
    %p133 = scmp.eq.s32.totalorder %s132, 0
    %s135 = sadd.s32 %s134, 1
    %s136 = scalar_select %p133, %s134, %s135
    %p139 = pneg %p133
    %p140 = scmp.eq.s32.totalorder %s12, 1
    %p141 = por %p139, %p140
    %p142 = scmp.ne.s32.totalorder %s134, %s137
    %p143 = scmp.eq.s32.totalorder %s12, 0
    %p144 = por %p142, %p143
    %p145 = scmp.ne.s32.totalorder %s134, %s137
    %p146 = scmp.eq.s32.totalorder %s17, 1
    %p147 = por %p145, %p146
    %p148 = scmp.ne.s32.totalorder %s137, %s138
    %p149 = scmp.eq.s32.totalorder %s17, 0
    %p150 = por %p148, %p149
    %p151 = scmp.ne.s32.totalorder %s137, %s138
    %p152 = scmp.eq.s32.totalorder %s18, 1
    %p153 = por %p151, %p152
    %p155 = scmp.ne.s32.totalorder %s138, %s154
    %p156 = scmp.eq.s32.totalorder %s18, 0
    %p157 = por %p155, %p156
    %s158 = ssub.s32 %s19, %s31
    %s159 = ssub.s32 %s20, %s27
    %s160 = sor.u32 %s158, %s159
    %p161 = scmp.eq.s32.totalorder %s160, 0
    %s163 = sadd.s32 %s162, 1
    %s164 = scalar_select %p161, %s162, %s163
    %p167 = pneg %p161
    %p168 = scmp.eq.s32.totalorder %s12, 1
    %p169 = por %p167, %p168
    %p170 = scmp.ne.s32.totalorder %s162, %s165
    %p171 = scmp.eq.s32.totalorder %s12, 0
    %p172 = por %p170, %p171
    %p173 = scmp.ne.s32.totalorder %s162, %s165
    %p174 = scmp.eq.s32.totalorder %s17, 1
    %p175 = por %p173, %p174
    %p176 = scmp.ne.s32.totalorder %s165, %s166
    %p177 = scmp.eq.s32.totalorder %s17, 0
    %p178 = por %p176, %p177
    %p179 = scmp.ne.s32.totalorder %s165, %s166
    %p180 = scmp.eq.s32.totalorder %s18, 1
    %p181 = por %p179, %p180
    %p183 = scmp.ne.s32.totalorder %s166, %s182
    %p184 = scmp.eq.s32.totalorder %s18, 0
    %p185 = por %p183, %p184
    %p186 = scmp.le.s32.totalorder 1, %s12
    %p187 = scmp.lt.s32.totalorder %s12, 3
    %p188 = pnand %p186, %p187
    %p189 = pneg %p188
    // Predicated region
    $region9: #{self_attention.2} parent=5 // pred_check
      _
    $region10: #{self_attention.2} parent=5 // pred_check_branch
      %191 = sbr.rel (%p188) target = $region12
    $region11: #{self_attention.2} parent=5 // pred_region
      %s192 = ssub.s32 %s12, 1
      // Predicated region
      $region13: #{self_attention.2} parent=11 // pred_check
        %p193 = pneg %p73
      $region14: #{self_attention.2} parent=11 // pred_check_branch
        %195 = sbr.rel (%p193) target = $region16
      $region15: #{self_attention.2} parent=11 // pred_region
        _
      $region16: #{self_attention.2} parent=11 // pred_fallthru
        _
      // Predicated region
      $region17: #{self_attention.2} parent=11 // pred_check
        %p196 = pneg %p94
      $region18: #{self_attention.2} parent=11 // pred_check_branch
        %198 = sbr.rel (%p196) target = $region20
      $region19: #{self_attention.2} parent=11 // pred_region
        _
      $region20: #{self_attention.2} parent=11 // pred_fallthru
        _
    $region12: #{self_attention.2} parent=5 // pred_fallthru
      _
    %p199 = scmp.lt.s32.totalorder %s12, 2
    // Predicated region
    $region21: #{self_attention.2} parent=5 // pred_check
      %p200 = pneg %p199
    $region22: #{self_attention.2} parent=5 // pred_check_branch
      %202 = sbr.rel (%p200) target = $region24
    $region23: #{self_attention.2} parent=5 // pred_region
      // Predicated region
      $region25: #{self_attention.2} parent=23 // pred_check
        %p203 = pneg %p46
      $region26: #{self_attention.2} parent=23 // pred_check_branch
        %205 = sbr.rel (%p203) target = $region28
      $region27: #{self_attention.2} parent=23 // pred_region
        %p206 = scmp.lt.s32.totalorder %s19, 1
        %s207 = scalar_select %p206, %s19, 1
        %p208 = scmp.lt.s32.totalorder %s20, 0
        %s209 = scalar_select %p208, %s20, 0
        %s210 = sadd.s32 %s209, %s207
        %s211 = smul.addr %s210, 8
        %s212 = scalar_lea.vmem %s0, %s211
      $region28: #{self_attention.2} parent=23 // pred_fallthru
        _
    $region24: #{self_attention.2} parent=5 // pred_fallthru
      _
    %p213 = scmp.le.s32.totalorder 1, %s12
    %p214 = scmp.lt.s32.totalorder %s12, 3
    %p215 = pnand %p213, %p214
    %p216 = pneg %p215
    // Predicated region
    $region29: #{self_attention.2} parent=5 // pred_check
      _
    $region30: #{self_attention.2} parent=5 // pred_check_branch
      %218 = sbr.rel (%p215) target = $region32
    $region31: #{self_attention.2} parent=5 // pred_region
      %s219 = ssub.s32 %s12, 1
      %p220 = scmp.lt.s32.totalorder %s21, 1
      %s221 = scalar_select %p220, %s21, 1
      %p222 = scmp.lt.s32.totalorder %s22, 0
      %s223 = scalar_select %p222, %s22, 0
      %s224 = sadd.s32 %s223, %s221
      %s225 = smul.addr %s224, 8
      %s226 = scalar_lea.vmem %s0, %s225
      %p227 = pneg %p52
      %p228 = pneg %p49
      %p229 = pneg %p73
      %p230 = pneg %p70
      %p231 = pneg %p94
      %p232 = pneg %p91
      %p233 = pneg %p122
      %p234 = pneg %p119
      %p235 = scmp.lt.s32.totalorder %s21, 1
      %s236 = scalar_select %p235, %s21, 1
      %p237 = scmp.lt.s32.totalorder %s22, 0
      %s238 = scalar_select %p237, %s22, 0
      %s239 = sadd.s32 %s238, %s236
      %s240 = smul.addr %s239, 8
      %s241 = scalar_lea.vmem %s3, %s240
      %p242 = pneg %p150
      %p243 = pneg %p147
      %p244 = scmp.lt.s32.totalorder %s21, 1
      %s245 = scalar_select %p244, %s21, 1
      %p246 = scmp.lt.s32.totalorder %s22, 0
      %s247 = scalar_select %p246, %s22, 0
      %s248 = sadd.s32 %s247, %s245
      %s249 = smul.addr %s248, 8
      %s250 = scalar_lea.vmem %s4, %s249
      %p251 = pneg %p178
      %p252 = pneg %p175
      %p253 = scmp.lt.s32.totalorder %s21, 1
      %s254 = scalar_select %p253, %s21, 1
      %p255 = scmp.lt.s32.totalorder %s22, 0
      %s256 = scalar_select %p255, %s22, 0
      %s257 = sadd.s32 %s256, %s254
      %s258 = smul.addr %s257, 8
      %s259 = scalar_lea.vmem %s5, %s258
      %p260 = scmp.lt.s32.totalorder %s21, 1
      %s261 = scalar_select %p260, %s21, 1
      %p262 = scmp.lt.s32.totalorder %s22, 0
      %s263 = scalar_select %p262, %s22, 0
      %s264 = sadd.s32 %s263, %s261
      %s265 = smul.addr %s264, 8
      %s266 = scalar_lea.vmem %s0, %s265
      %p267 = scmp.lt.s32.totalorder %s21, 1
      %s268 = scalar_select %p267, %s21, 1
      %p269 = scmp.lt.s32.totalorder %s22, 0
      %s270 = scalar_select %p269, %s22, 0
      %s271 = sadd.s32 %s270, %s268
      %s272 = smul.addr %s271, 8
      %s273 = scalar_lea.vmem %s3, %s272
      %p274 = scmp.lt.s32.totalorder %s21, 1
      %s275 = scalar_select %p274, %s21, 1
      %p276 = scmp.lt.s32.totalorder %s22, 0
      %s277 = scalar_select %p276, %s22, 0
      %s278 = sadd.s32 %s277, %s275
      %s279 = smul.addr %s278, 8
      %s280 = scalar_lea.vmem %s4, %s279
      %p281 = scmp.lt.s32.totalorder %s21, 1
      %s282 = scalar_select %p281, %s21, 1
      %p283 = scmp.lt.s32.totalorder %s22, 0
      %s284 = scalar_select %p283, %s22, 0
      %s285 = sadd.s32 %s284, %s282
      %s286 = smul.addr %s285, 8
      %s287 = scalar_lea.vmem %s5, %s286
      %v288 = vld [vmem:[%s266] sm:$0xff]
      %v289 = vld [vmem:[%s1] sm:$0xff]
      %v290 = vld [vmem:[%s1 + $0x8] sm:$0xff]
      %v291 = vld [vmem:[%s1 + $0x10] sm:$0xff]
      %v292 = vld [vmem:[%s1 + $0x18] sm:$0xff]
      %v293 = vld [vmem:[%s2] sm:$0x1]
      %v295 = vperm.slane %v293, 0
      %vm297 = vcmask 261120
      %v299 = vsel %vm297, %v288, 0
      %301 = vmatpush.msra.mxu0 0.0
      %302 = vmatpush.msra.mxu0 0.0
      %303 = vmatpush.msra.mxu0 0.0
      %304 = vmatpush.msra.mxu0 0.0
      %305 = vmatpush.msra.mxu0 0.0
      %306 = vmatpush.msra.mxu0 0.0
      %307 = vmatpush.msra.mxu0 0.0
      %308 = vmatpush.msra.mxu0 0.0
      %309 = vmatpush.msra.mxu0 0.0
      %310 = vmatpush.msra.mxu0 0.0
      %311 = vmatpush.msra.mxu0 0.0
      %312 = vmatpush.msra.mxu0 0.0
      %313 = vmatpush.msra.mxu0 %v292
      %314 = vmatpush.msra.mxu0 %v291
      %315 = vmatpush.msra.mxu0 %v290
      %316 = vmatpush.msra.mxu0 %v289
      %317 = vmatmul.f32.gmra.mxu0 %v299
      %v318 = vpop.f32.mrf.mxu0
      %v319 = vadd.f32 %v295, %v318
      %320 = vdwg.mxu0
      %321 = vst.msk [vmem:[%s273] sm:$0xff] %vm297, %v319
      %323 = vrot.lane.b32.xlu0 %v319, 96
      %v324 = vpop.permute.xlu0 %323
      %326 = vst.msk [vmem:[%s280] sm:$0xff] %vm297, %v324
      %327 = vrot.lane.b32.xlu0 %v319, 64
      %v328 = vpop.permute.xlu0 %327
      %330 = vst.msk [vmem:[%s287] sm:$0xff] %vm297, %v328
      %p331 = scmp.lt.s32.totalorder %s21, 1
      %s332 = scalar_select %p331, %s21, 1
      %p333 = scmp.lt.s32.totalorder %s22, 0
      %s334 = scalar_select %p333, %s22, 0
      %s335 = sadd.s32 %s334, %s332
      %s336 = smul.addr %s335, 8
      %s337 = scalar_lea.vmem %s3, %s336
      %p338 = scmp.lt.s32.totalorder %s21, 1
      %s339 = scalar_select %p338, %s21, 1
      %p340 = scmp.lt.s32.totalorder %s22, 0
      %s341 = scalar_select %p340, %s22, 0
      %s342 = sadd.s32 %s341, %s339
      %s343 = smul.addr %s342, 8
      %s344 = scalar_lea.vmem %s4, %s343
      %p345 = scmp.lt.s32.totalorder %s21, 1
      %s346 = scalar_select %p345, %s21, 1
      %p347 = scmp.lt.s32.totalorder %s22, 0
      %s348 = scalar_select %p347, %s22, 0
      %s349 = sadd.s32 %s348, %s346
      %s350 = smul.addr %s349, 8
      %s351 = scalar_lea.vmem %s5, %s350
      // Predicated region
      $region33: #{self_attention.2} parent=31 // pred_check
        %p352 = pneg %p119
      $region34: #{self_attention.2} parent=31 // pred_check_branch
        %354 = sbr.rel (%p352) target = $region36
      $region35: #{self_attention.2} parent=31 // pred_region
        _
      $region36: #{self_attention.2} parent=31 // pred_fallthru
        _
      // Predicated region
      $region37: #{self_attention.2} parent=31 // pred_check
        %p355 = pneg %p147
      $region38: #{self_attention.2} parent=31 // pred_check_branch
        %357 = sbr.rel (%p355) target = $region40
      $region39: #{self_attention.2} parent=31 // pred_region
        _
      $region40: #{self_attention.2} parent=31 // pred_fallthru
        _
      // Predicated region
      $region41: #{self_attention.2} parent=31 // pred_check
        %p358 = pneg %p175
      $region42: #{self_attention.2} parent=31 // pred_check_branch
        %360 = sbr.rel (%p358) target = $region44
      $region43: #{self_attention.2} parent=31 // pred_region
        _
      $region44: #{self_attention.2} parent=31 // pred_fallthru
        _
    $region32: #{self_attention.2} parent=5 // pred_fallthru
      _
    %p361 = scmp.le.s32.totalorder 2, %s12
    // Predicated region
    $region45: #{self_attention.2} parent=5 // pred_check
      %p362 = pneg %p361
    $region46: #{self_attention.2} parent=5 // pred_check_branch
      %364 = sbr.rel (%p362) target = $region48
    $region47: #{self_attention.2} parent=5 // pred_region
      %s365 = ssub.s32 %s12, 2
      // Predicated region
      $region49: #{self_attention.2} parent=47 // pred_check
        %p366 = pneg %p125
      $region50: #{self_attention.2} parent=47 // pred_check_branch
        %368 = sbr.rel (%p366) target = $region52
      $region51: #{self_attention.2} parent=47 // pred_region
        %p369 = scmp.lt.s32.totalorder %s23, 1
        %s370 = scalar_select %p369, %s23, 1
        %p371 = scmp.lt.s32.totalorder %s24, 0
        %s372 = scalar_select %p371, %s24, 0
        %s373 = sadd.s32 %s372, %s370
        %s374 = smul.addr %s373, 8
        %s375 = scalar_lea.vmem %s3, %s374
      $region52: #{self_attention.2} parent=47 // pred_fallthru
        _
      // Predicated region
      $region53: #{self_attention.2} parent=47 // pred_check
        %p376 = pneg %p153
      $region54: #{self_attention.2} parent=47 // pred_check_branch
        %378 = sbr.rel (%p376) target = $region56
      $region55: #{self_attention.2} parent=47 // pred_region
        %p379 = scmp.lt.s32.totalorder %s23, 1
        %s380 = scalar_select %p379, %s23, 1
        %p381 = scmp.lt.s32.totalorder %s24, 0
        %s382 = scalar_select %p381, %s24, 0
        %s383 = sadd.s32 %s382, %s380
        %s384 = smul.addr %s383, 8
        %s385 = scalar_lea.vmem %s4, %s384
      $region56: #{self_attention.2} parent=47 // pred_fallthru
        _
      // Predicated region
      $region57: #{self_attention.2} parent=47 // pred_check
        %p386 = pneg %p181
      $region58: #{self_attention.2} parent=47 // pred_check_branch
        %388 = sbr.rel (%p386) target = $region60
      $region59: #{self_attention.2} parent=47 // pred_region
        %p389 = scmp.lt.s32.totalorder %s23, 1
        %s390 = scalar_select %p389, %s23, 1
        %p391 = scmp.lt.s32.totalorder %s24, 0
        %s392 = scalar_select %p391, %s24, 0
        %s393 = sadd.s32 %s392, %s390
        %s394 = smul.addr %s393, 8
        %s395 = scalar_lea.vmem %s5, %s394
      $region60: #{self_attention.2} parent=47 // pred_fallthru
        _
    $region48: #{self_attention.2} parent=5 // pred_fallthru
      _
  $region6: #{self_attention.2} parent=0 // loop_footer
    %s16 = sadd.s32 1, %s12
  $region7: #{self_attention.2} parent=0 // loop_footer_branch
    %11 = sbr.rel target = $region3
  $region8: #{self_attention.2} parent=0 // loop_exit
    _

// kernel: self_attention.3
$region0: #{self_attention.3}
  #allocation0 [shape = 'u32[]', space=smem, size = 0x4, offset = 0x4, fixed_abs, tag = 'smem constant byte address 0x4 - core index']
  #allocation1 [shape = 'u32[72,128]{1,0:T(1,128)}', space=vmem, size = 0x9000, scoped, tag = 'internal scratch']
  #allocation2 [shape = 'f32[8,4]{1,0:T(8,128)}', space=vmem, size = 0x1000, scoped, tag = 'scratch operand']
  #allocation3 [shape = 'f32[8,4]{1,0:T(8,128)}', space=vmem, size = 0x1000, scoped, tag = 'scratch operand']
  #allocation4 [shape = 'f32[8,32]{1,0:T(8,128)}', space=vmem, size = 0x1000, scoped, tag = 'scratch operand']
  %s0 = inlined_call_operand.vmem [shape: f32[2,8,32], index: 0, kind: input, shape index: {}]
  %s1 = inlined_call_operand.vmem [shape: f32[2,8,32], index: 1, kind: input, shape index: {}]
  %s2 = inlined_call_operand.vmem [shape: f32[2,8,32], index: 2, kind: input, shape index: {}]
  %s3 = inlined_call_operand.vmem [shape: f32[32,32], index: 3, kind: input, shape index: {}]
  %s4 = inlined_call_operand.vmem [shape: f32[1,32], index: 4, kind: input, shape index: {}]
  %s5 = inlined_call_operand.hbm [shape: f32[2,8,32], index: 5, kind: output, shape index: {}]
  %s6 = sld [smem:[#allocation0]]
  $region61: #{self_attention.3} parent=0
    _
  %s8 = ssub.s32 1, %s6
  %s9 = scalar_select 0, %s8, %s6
  $region1: #{self_attention.3} parent=0
    #allocation5 [shape = 'u8[8192]{0}', space=vmem, size = 0x2000, scoped, tag = 'output window, operand 0']
    #allocation6 [shape = 's32[2]{0}', space=sflag, size = 0x8, scoped, tag = 'scoped memory for self_attention.3']
    %10 = vsyncpa [#allocation6], 0
    %s11 = scalar_lea.sflag [#allocation6], 1
    %12 = vsyncpa %s11, 0
    loop: start=0, step=1, limit=4
    $region2: #{self_attention.3} parent=1 // loop_pre_header
      _
    $region3: #{self_attention.3} parent=1 // loop_header
      %s14 = sphi 0, %s18
      %p15 = scmp.ge.s32.totalorder %s14, 4
      %s21 = sphi 0, %s40
      %s22 = sphi 0, %s36
      %s23 = sphi 0, %s32
      %s24 = sphi 0, %s21
      %s25 = sphi 0, %s22
      %s26 = sphi 0, %s23
      %s27 = sphi 0, %s24
      %s28 = sphi 0, %s25
      %s29 = sphi 0, %s26
      %s45 = sphi 0, %s47
      %s48 = sphi 0, %s45
      %s49 = sphi 0, %s48
      %s65 = sphi 0, %s49
      %s73 = sphi 0, %s75
      %s76 = sphi 0, %s73
      %s77 = sphi 0, %s76
      %s93 = sphi 0, %s77
      %s101 = sphi 0, %s103
      %s104 = sphi 0, %s101
      %s105 = sphi 0, %s104
      %s121 = sphi 0, %s105
      %s125 = sphi 0, %s125
      %s127 = sphi 0, %s125
      %s128 = sphi 0, %s127
      %s142 = sphi 0, %s128
      %s146 = sphi 0, %s146
      %s148 = sphi 0, %s146
      %s149 = sphi 0, %s148
      %s163 = sphi 0, %s149
      %s171 = sphi 0, %s173
      %s174 = sphi 0, %s171
      %s175 = sphi 0, %s174
      %s191 = sphi 0, %s175
    $region4: #{self_attention.3} parent=1 // loop_header_branch
      %17 = sbr.rel (%p15) target = $region8
    $region5: #{self_attention.3} parent=1 // loop_body
      %s19 = ssub.s32 %s14, 1
      %s20 = ssub.s32 %s14, 2
      %s30 = sadd.s32 1, %s23
      %p31 = scmp.ge.s32.totalorder %s30, 1
      %s32 = scalar_select %p31, 0, %s30
      %s33 = sadd.s32 1, %s22
      %s34 = scalar_select %p31, %s33, %s22
      %p35 = scmp.ge.s32.totalorder %s34, 1
      %s36 = scalar_select %p35, 0, %s34
      %s37 = sadd.s32 1, %s21
      %s38 = scalar_select %p35, %s37, %s21
      %p39 = scmp.ge.s32.totalorder %s38, 2
      %s40 = scalar_select %p39, 0, %s38
      %s41 = ssub.s32 %s21, %s40
      %s42 = ssub.s32 %s22, %s36
      %s43 = sor.u32 %s41, %s42
      %p44 = scmp.eq.s32.totalorder %s43, 0
      %s46 = sadd.s32 %s45, 1
      %s47 = scalar_select %p44, %s45, %s46
      %p50 = pneg %p44
      %p51 = scmp.eq.s32.totalorder %s14, 1
      %p52 = por %p50, %p51
      %p53 = scmp.ne.s32.totalorder %s45, %s48
      %p54 = scmp.eq.s32.totalorder %s14, 0
      %p55 = por %p53, %p54
      %p56 = scmp.ne.s32.totalorder %s45, %s48
      %p57 = scmp.eq.s32.totalorder %s19, 1
      %p58 = por %p56, %p57
      %p59 = scmp.ne.s32.totalorder %s48, %s49
      %p60 = scmp.eq.s32.totalorder %s19, 0
      %p61 = por %p59, %p60
      %p62 = scmp.ne.s32.totalorder %s48, %s49
      %p63 = scmp.eq.s32.totalorder %s20, 1
      %p64 = por %p62, %p63
      %p66 = scmp.ne.s32.totalorder %s49, %s65
      %p67 = scmp.eq.s32.totalorder %s20, 0
      %p68 = por %p66, %p67
      %s69 = ssub.s32 %s21, %s40
      %s70 = ssub.s32 %s23, %s32
      %s71 = sor.u32 %s69, %s70
      %p72 = scmp.eq.s32.totalorder %s71, 0
      %s74 = sadd.s32 %s73, 1
      %s75 = scalar_select %p72, %s73, %s74
      %p78 = pneg %p72
      %p79 = scmp.eq.s32.totalorder %s14, 1
      %p80 = por %p78, %p79
      %p81 = scmp.ne.s32.totalorder %s73, %s76
      %p82 = scmp.eq.s32.totalorder %s14, 0
      %p83 = por %p81, %p82
      %p84 = scmp.ne.s32.totalorder %s73, %s76
      %p85 = scmp.eq.s32.totalorder %s19, 1
      %p86 = por %p84, %p85
      %p87 = scmp.ne.s32.totalorder %s76, %s77
      %p88 = scmp.eq.s32.totalorder %s19, 0
      %p89 = por %p87, %p88
      %p90 = scmp.ne.s32.totalorder %s76, %s77
      %p91 = scmp.eq.s32.totalorder %s20, 1
      %p92 = por %p90, %p91
      %p94 = scmp.ne.s32.totalorder %s77, %s93
      %p95 = scmp.eq.s32.totalorder %s20, 0
      %p96 = por %p94, %p95
      %s97 = ssub.s32 %s21, %s40
      %s98 = ssub.s32 %s23, %s32
      %s99 = sor.u32 %s97, %s98
      %p100 = scmp.eq.s32.totalorder %s99, 0
      %s102 = sadd.s32 %s101, 1
      %s103 = scalar_select %p100, %s101, %s102
      %p106 = pneg %p100
      %p107 = scmp.eq.s32.totalorder %s14, 1
      %p108 = por %p106, %p107
      %p109 = scmp.ne.s32.totalorder %s101, %s104
      %p110 = scmp.eq.s32.totalorder %s14, 0
      %p111 = por %p109, %p110
      %p112 = scmp.ne.s32.totalorder %s101, %s104
      %p113 = scmp.eq.s32.totalorder %s19, 1
      %p114 = por %p112, %p113
      %p115 = scmp.ne.s32.totalorder %s104, %s105
      %p116 = scmp.eq.s32.totalorder %s19, 0
      %p117 = por %p115, %p116
      %p118 = scmp.ne.s32.totalorder %s104, %s105
      %p119 = scmp.eq.s32.totalorder %s20, 1
      %p120 = por %p118, %p119
      %p122 = scmp.ne.s32.totalorder %s105, %s121
      %p123 = scmp.eq.s32.totalorder %s20, 0
      %p124 = por %p122, %p123
      %s126 = sadd.s32 %s125, 1
      %p129 = scmp.eq.s32.totalorder %s14, 1
      %p130 = scmp.ne.s32.totalorder %s125, %s127
      %p131 = scmp.eq.s32.totalorder %s14, 0
      %p132 = por %p130, %p131
      %p133 = scmp.ne.s32.totalorder %s125, %s127
      %p134 = scmp.eq.s32.totalorder %s19, 1
      %p135 = por %p133, %p134
      %p136 = scmp.ne.s32.totalorder %s127, %s128
      %p137 = scmp.eq.s32.totalorder %s19, 0
      %p138 = por %p136, %p137
      %p139 = scmp.ne.s32.totalorder %s127, %s128
      %p140 = scmp.eq.s32.totalorder %s20, 1
      %p141 = por %p139, %p140
      %p143 = scmp.ne.s32.totalorder %s128, %s142
      %p144 = scmp.eq.s32.totalorder %s20, 0
      %p145 = por %p143, %p144
      %s147 = sadd.s32 %s146, 1
      %p150 = scmp.eq.s32.totalorder %s14, 1
      %p151 = scmp.ne.s32.totalorder %s146, %s148
      %p152 = scmp.eq.s32.totalorder %s14, 0
      %p153 = por %p151, %p152
      %p154 = scmp.ne.s32.totalorder %s146, %s148
      %p155 = scmp.eq.s32.totalorder %s19, 1
      %p156 = por %p154, %p155
      %p157 = scmp.ne.s32.totalorder %s148, %s149
      %p158 = scmp.eq.s32.totalorder %s19, 0
      %p159 = por %p157, %p158
      %p160 = scmp.ne.s32.totalorder %s148, %s149
      %p161 = scmp.eq.s32.totalorder %s20, 1
      %p162 = por %p160, %p161
      %p164 = scmp.ne.s32.totalorder %s149, %s163
      %p165 = scmp.eq.s32.totalorder %s20, 0
      %p166 = por %p164, %p165
      %s167 = ssub.s32 %s21, %s40
      %s168 = ssub.s32 %s22, %s36
      %s169 = sor.u32 %s167, %s168
      %p170 = scmp.eq.s32.totalorder %s169, 0
      %s172 = sadd.s32 %s171, 1
      %s173 = scalar_select %p170, %s171, %s172
      %p176 = pneg %p170
      %p177 = scmp.eq.s32.totalorder %s14, 1
      %p178 = por %p176, %p177
      %p179 = scmp.ne.s32.totalorder %s171, %s174
      %p180 = scmp.eq.s32.totalorder %s14, 0
      %p181 = por %p179, %p180
      %p182 = scmp.ne.s32.totalorder %s171, %s174
      %p183 = scmp.eq.s32.totalorder %s19, 1
      %p184 = por %p182, %p183
      %p185 = scmp.ne.s32.totalorder %s174, %s175
      %p186 = scmp.eq.s32.totalorder %s19, 0
      %p187 = por %p185, %p186
      %p188 = scmp.ne.s32.totalorder %s174, %s175
      %p189 = scmp.eq.s32.totalorder %s20, 1
      %p190 = por %p188, %p189
      %p192 = scmp.ne.s32.totalorder %s175, %s191
      %p193 = scmp.eq.s32.totalorder %s20, 0
      %p194 = por %p192, %p193
      %p195 = scmp.le.s32.totalorder 1, %s14
      %p196 = scmp.lt.s32.totalorder %s14, 3
      %p197 = pnand %p195, %p196
      %p198 = pneg %p197
      // Predicated region
      $region9: #{self_attention.3} parent=5 // pred_check
        _
      $region10: #{self_attention.3} parent=5 // pred_check_branch
        %200 = sbr.rel (%p197) target = $region12
      $region11: #{self_attention.3} parent=5 // pred_region
        %s201 = ssub.s32 %s14, 1
        // Predicated region
        $region13: #{self_attention.3} parent=11 // pred_check
          %p202 = pneg %p138
        $region14: #{self_attention.3} parent=11 // pred_check_branch
          %204 = sbr.rel (%p202) target = $region16
        $region15: #{self_attention.3} parent=11 // pred_region
          _
        $region16: #{self_attention.3} parent=11 // pred_fallthru
          _
        // Predicated region
        $region17: #{self_attention.3} parent=11 // pred_check
          %p205 = pneg %p159
        $region18: #{self_attention.3} parent=11 // pred_check_branch
          %207 = sbr.rel (%p205) target = $region20
        $region19: #{self_attention.3} parent=11 // pred_region
          _
        $region20: #{self_attention.3} parent=11 // pred_fallthru
          _
      $region12: #{self_attention.3} parent=5 // pred_fallthru
        _
      %p208 = scmp.lt.s32.totalorder %s14, 2
      // Predicated region
      $region21: #{self_attention.3} parent=5 // pred_check
        %p209 = pneg %p208
      $region22: #{self_attention.3} parent=5 // pred_check_branch
        %211 = sbr.rel (%p209) target = $region24
      $region23: #{self_attention.3} parent=5 // pred_region
        // Predicated region
        $region25: #{self_attention.3} parent=23 // pred_check
          %p212 = pneg %p55
        $region26: #{self_attention.3} parent=23 // pred_check_branch
          %214 = sbr.rel (%p212) target = $region28
        $region27: #{self_attention.3} parent=23 // pred_region
          %p215 = scmp.lt.s32.totalorder %s21, 1
          %s216 = scalar_select %p215, %s21, 1
          %p217 = scmp.lt.s32.totalorder %s22, 0
          %s218 = scalar_select %p217, %s22, 0
          %s219 = sadd.s32 %s218, %s216
          %s220 = smul.addr %s219, 8
          %s221 = scalar_lea.vmem %s0, %s220
        $region28: #{self_attention.3} parent=23 // pred_fallthru
          _
        // Predicated region
        $region29: #{self_attention.3} parent=23 // pred_check
          %p222 = pneg %p83
        $region30: #{self_attention.3} parent=23 // pred_check_branch
          %224 = sbr.rel (%p222) target = $region32
        $region31: #{self_attention.3} parent=23 // pred_region
          %p225 = scmp.lt.s32.totalorder %s21, 1
          %s226 = scalar_select %p225, %s21, 1
          %p227 = scmp.lt.s32.totalorder %s23, 0
          %s228 = scalar_select %p227, %s23, 0
          %s229 = sadd.s32 %s228, %s226
          %s230 = smul.addr %s229, 8
          %s231 = scalar_lea.vmem %s1, %s230
        $region32: #{self_attention.3} parent=23 // pred_fallthru
          _
        // Predicated region
        $region33: #{self_attention.3} parent=23 // pred_check
          %p232 = pneg %p111
        $region34: #{self_attention.3} parent=23 // pred_check_branch
          %234 = sbr.rel (%p232) target = $region36
        $region35: #{self_attention.3} parent=23 // pred_region
          %p235 = scmp.lt.s32.totalorder %s21, 1
          %s236 = scalar_select %p235, %s21, 1
          %p237 = scmp.lt.s32.totalorder %s23, 0
          %s238 = scalar_select %p237, %s23, 0
          %s239 = sadd.s32 %s238, %s236
          %s240 = smul.addr %s239, 8
          %s241 = scalar_lea.vmem %s2, %s240
        $region36: #{self_attention.3} parent=23 // pred_fallthru
          _
      $region24: #{self_attention.3} parent=5 // pred_fallthru
        _
      %p242 = scmp.le.s32.totalorder 1, %s14
      %p243 = scmp.lt.s32.totalorder %s14, 3
      %p244 = pnand %p242, %p243
      %p245 = pneg %p244
      // Predicated region
      $region37: #{self_attention.3} parent=5 // pred_check
        _
      $region38: #{self_attention.3} parent=5 // pred_check_branch
        %247 = sbr.rel (%p244) target = $region40
      $region39: #{self_attention.3} parent=5 // pred_region
        %s248 = ssub.s32 %s14, 1
        %p249 = scmp.lt.s32.totalorder %s24, 1
        %s250 = scalar_select %p249, %s24, 1
        %p251 = scmp.lt.s32.totalorder %s25, 0
        %s252 = scalar_select %p251, %s25, 0
        %s253 = sadd.s32 %s252, %s250
        %s254 = smul.addr %s253, 8
        %s255 = scalar_lea.vmem %s0, %s254
        %p256 = pneg %p61
        %p257 = pneg %p58
        %p258 = scmp.lt.s32.totalorder %s24, 1
        %s259 = scalar_select %p258, %s24, 1
        %p260 = scmp.lt.s32.totalorder %s26, 0
        %s261 = scalar_select %p260, %s26, 0
        %s262 = sadd.s32 %s261, %s259
        %s263 = smul.addr %s262, 8
        %s264 = scalar_lea.vmem %s1, %s263
        %p265 = pneg %p89
        %p266 = pneg %p86
        %p267 = scmp.lt.s32.totalorder %s24, 1
        %s268 = scalar_select %p267, %s24, 1
        %p269 = scmp.lt.s32.totalorder %s26, 0
        %s270 = scalar_select %p269, %s26, 0
        %s271 = sadd.s32 %s270, %s268
        %s272 = smul.addr %s271, 8
        %s273 = scalar_lea.vmem %s2, %s272
        %p274 = pneg %p117
        %p275 = pneg %p114
        %p276 = pneg %p138
        %p277 = pneg %p135
        %p278 = pneg %p159
        %p279 = pneg %p156
        %p280 = pneg %p187
        %p281 = pneg %p184
        %s282 = sand.u32 %s174, 1
        %s283 = scalar_lea.sflag [#allocation6], %s282
        %s284 = sand.u32 %s174, 1
        %s285 = smul.addr %s284, 8
        %s286 = scalar_lea.vmem [#allocation5], %s285
        %p287 = scmp.lt.s32.totalorder %s24, 1
        %s288 = scalar_select %p287, %s24, 1
        %p289 = scmp.lt.s32.totalorder %s25, 0
        %s290 = scalar_select %p289, %s25, 0
        %s291 = sadd.s32 %s290, %s288
        %s292 = smul.addr %s291, 8
        %s293 = scalar_lea.vmem %s0, %s292
        %p294 = scmp.lt.s32.totalorder %s24, 1
        %s295 = scalar_select %p294, %s24, 1
        %p296 = scmp.lt.s32.totalorder %s26, 0
        %s297 = scalar_select %p296, %s26, 0
        %s298 = sadd.s32 %s297, %s295
        %s299 = smul.addr %s298, 8
        %s300 = scalar_lea.vmem %s1, %s299
        %p301 = scmp.lt.s32.totalorder %s24, 1
        %s302 = scalar_select %p301, %s24, 1
        %p303 = scmp.lt.s32.totalorder %s26, 0
        %s304 = scalar_select %p303, %s26, 0
        %s305 = sadd.s32 %s304, %s302
        %s306 = smul.addr %s305, 8
        %s307 = scalar_lea.vmem %s2, %s306
        %p308 = scmp.eq.s32.totalorder %s26, 0
        // Predicated region
        $region41: #{self_attention.3} parent=39 // pred_check
          %p309 = pneg %p308
        $region42: #{self_attention.3} parent=39 // pred_check_branch
          %311 = sbr.rel (%p309) target = $region44
        $region43: #{self_attention.3} parent=39 // pred_region
          %vm312 = vcmask 31744
          %313 = vst.msk [vmem:[#allocation2] sm:$0xff] %vm312, -inf
          %314 = vst.msk [vmem:[#allocation3] sm:$0xff] %vm312, 0.0
          %vm315 = vcmask 261120
          %316 = vst.msk [vmem:[#allocation4] sm:$0xff] %vm315, 0.0
        $region44: #{self_attention.3} parent=39 // pred_fallthru
          _
        %v317 = vld [vmem:[%s293] sm:$0xff]
        %v318 = vld [vmem:[%s300] sm:$0xff]
        %v319 = vld [vmem:[%s307] sm:$0xff]
        %vm320 = vcmask 64512
        %v322 = vsel %vm320, %v317, 0
        %v325 = vsel %vm320, %v318, 0
        %327 = vmatpush.xpose.msra.mxu0 0.0
        %328 = vmatpush.xpose.msra.mxu0 0.0
        %329 = vmatpush.xpose.msra.mxu0 0.0
        %330 = vmatpush.xpose.msra.mxu0 0.0
        %331 = vmatpush.xpose.msra.mxu0 0.0
        %332 = vmatpush.xpose.msra.mxu0 0.0
        %333 = vmatpush.xpose.msra.mxu0 0.0
        %334 = vmatpush.xpose.msra.mxu0 0.0
        %335 = vmatpush.xpose.msra.mxu0 0.0
        %336 = vmatpush.xpose.msra.mxu0 0.0
        %337 = vmatpush.xpose.msra.mxu0 0.0
        %338 = vmatpush.xpose.msra.mxu0 0.0
        %339 = vmatpush.xpose.msra.mxu0 0.0
        %340 = vmatpush.xpose.msra.mxu0 0.0
        %341 = vmatpush.xpose.msra.mxu0 0.0
        %342 = vmatpush.xpose.msra.mxu0 %v325
        %343 = vmatmul.f32.gmra.mxu0 %v322
        %v344 = vpop.f32.mrf.mxu0
        %v345 = vadd.f32 0.0, %v344
        %346 = vdwg.mxu0
        %v347 = vld [vmem:[#allocation2] sm:$0xff]
        %v348 = vsel %vm320, %v345, -inf
        %349 = vmax.xlane.f32.xlu0 %v348
        %v350 = vpop.xlane.xlu0 %349
        %v351 = vmax.f32 %v347, %v350
        %v352 = vsub.f32 %v347, %v351
        %v353 = vmul.f32 %v352, 1.442695
        %v354 = vpow.pop %v353
        %356 = vset.pattern.permute.xlu0 0
        %357 = vperm.xlu0 %356, %v351
        %v358 = vpop.permute.xlu0 %357
        %v360 = vsub.f32 %v345, %v358
        %v361 = vmul.f32 %v360, 1.442695
        %v362 = vpow.pop %v361
        %v363 = vld [vmem:[#allocation3] sm:$0xff]
        %v364 = vmul.f32 %v354, %v363
        %v365 = vsel %vm320, %v362, 0.0
        %366 = vadd.xlane.f32.xlu0 %v365
        %v367 = vpop.xlane.xlu0 %366
        %v368 = vadd.f32 %v364, %v367
        %vm369 = vcmask 7168
        %370 = vst.msk [vmem:[#allocation3] sm:$0xff] %vm369, %v368
        %v371 = vld [vmem:[#allocation4] sm:$0xff]
        %373 = vset.pattern.permute.xlu0 0
        %374 = vperm.xlu0 %373, %v354
        %v375 = vpop.permute.xlu0 %374
        %v377 = vmul.f32 %v375, %v371
        %v379 = vsel %vm320, %v362, 0
        %381 = vmatpush.msra.mxu0 0.0
        %382 = vmatpush.msra.mxu0 0.0
        %383 = vmatpush.msra.mxu0 0.0
        %384 = vmatpush.msra.mxu0 0.0
        %385 = vmatpush.msra.mxu0 0.0
        %386 = vmatpush.msra.mxu0 0.0
        %387 = vmatpush.msra.mxu0 0.0
        %388 = vmatpush.msra.mxu0 0.0
        %389 = vmatpush.msra.mxu0 0.0
        %390 = vmatpush.msra.mxu0 0.0
        %391 = vmatpush.msra.mxu0 0.0
        %392 = vmatpush.msra.mxu0 0.0
        %393 = vmatpush.msra.mxu0 0.0
        %394 = vmatpush.msra.mxu0 0.0
        %395 = vmatpush.msra.mxu0 0.0
        %396 = vmatpush.msra.mxu0 %v319
        %397 = vmatmul.f32.gmra.mxu0 %v379
        %v398 = vpop.f32.mrf.mxu0
        %v399 = vadd.f32 0.0, %v398
        %400 = vdwg.mxu0
        %v401 = vadd.f32 %v377, %v399
        %402 = vst.msk [vmem:[#allocation4] sm:$0xff] %vm320, %v401
        %403 = vst.msk [vmem:[#allocation2] sm:$0xff] %vm369, %v351
        %404 = vrot.lane.b32.xlu0 %v317, 120
        %v405 = vpop.permute.xlu0 %404
        %406 = vrot.lane.b32.xlu0 %v318, 120
        %v407 = vpop.permute.xlu0 %406
        %v408 = vsel %vm320, %v405, 0
        %v410 = vsel %vm320, %v407, 0
        %412 = vmatpush.xpose.msra.mxu0 0.0
        %413 = vmatpush.xpose.msra.mxu0 0.0
        %414 = vmatpush.xpose.msra.mxu0 0.0
        %415 = vmatpush.xpose.msra.mxu0 0.0
        %416 = vmatpush.xpose.msra.mxu0 0.0
        %417 = vmatpush.xpose.msra.mxu0 0.0
        %418 = vmatpush.xpose.msra.mxu0 0.0
        %419 = vmatpush.xpose.msra.mxu0 0.0
        %420 = vmatpush.xpose.msra.mxu0 0.0
        %421 = vmatpush.xpose.msra.mxu0 0.0
        %422 = vmatpush.xpose.msra.mxu0 0.0
        %423 = vmatpush.xpose.msra.mxu0 0.0
        %424 = vmatpush.xpose.msra.mxu0 0.0
        %425 = vmatpush.xpose.msra.mxu0 0.0
        %426 = vmatpush.xpose.msra.mxu0 0.0
        %427 = vmatpush.xpose.msra.mxu0 %v410
        %428 = vmatmul.f32.gmra.mxu0 %v408
        %v429 = vpop.f32.mrf.mxu0
        %v430 = vadd.f32 0.0, %v429
        %431 = vdwg.mxu0
        %v432 = vld [vmem:[#allocation2] sm:$0xff]
        %v433 = vsel %vm320, %v430, -inf
        %434 = vmax.xlane.f32.xlu0 %v433
        %v435 = vpop.xlane.xlu0 %434
        %v436 = vmax.f32 %v432, %v435
        %v437 = vsub.f32 %v432, %v436
        %v438 = vmul.f32 %v437, 1.442695
        %v439 = vpow.pop %v438
        %441 = vset.pattern.permute.xlu0 1
        %442 = vperm.xlu0 %441, %v436
        %v443 = vpop.permute.xlu0 %442
        %v445 = vsub.f32 %v430, %v443
        %v446 = vmul.f32 %v445, 1.442695
        %v447 = vpow.pop %v446
        %v448 = vld [vmem:[#allocation3] sm:$0xff]
        %v449 = vmul.f32 %v439, %v448
        %v450 = vsel %vm320, %v447, 0.0
        %451 = vadd.xlane.f32.xlu0 %v450
        %v452 = vpop.xlane.xlu0 %451
        %v453 = vadd.f32 %v449, %v452
        %vm454 = vcmask 15368
        %455 = vst.msk [vmem:[#allocation3] sm:$0xff] %vm454, %v453
        %v456 = vld [vmem:[#allocation4] sm:$0xff]
        %458 = vset.pattern.permute.xlu0 1
        %459 = vperm.xlu0 %458, %v439
        %v460 = vpop.permute.xlu0 %459
        %v462 = vmul.f32 %v460, %v456
        %464 = vrot.lane.b32.xlu0 %v319, 120
        %v465 = vpop.permute.xlu0 %464
        %v468 = vsel %vm320, %v447, 0
        %470 = vmatpush.msra.mxu0 0.0
        %471 = vmatpush.msra.mxu0 0.0
        %472 = vmatpush.msra.mxu0 0.0
        %473 = vmatpush.msra.mxu0 0.0
        %474 = vmatpush.msra.mxu0 0.0
        %475 = vmatpush.msra.mxu0 0.0
        %476 = vmatpush.msra.mxu0 0.0
        %477 = vmatpush.msra.mxu0 0.0
        %478 = vmatpush.msra.mxu0 0.0
        %479 = vmatpush.msra.mxu0 0.0
        %480 = vmatpush.msra.mxu0 0.0
        %481 = vmatpush.msra.mxu0 0.0
        %482 = vmatpush.msra.mxu0 0.0
        %483 = vmatpush.msra.mxu0 0.0
        %484 = vmatpush.msra.mxu0 0.0
        %485 = vmatpush.msra.mxu0 %v465
        %486 = vmatmul.f32.gmra.mxu0 %v468
        %v487 = vpop.f32.mrf.mxu0
        %v488 = vadd.f32 0.0, %v487
        %489 = vdwg.mxu0
        %491 = vrot.lane.b32.xlu0 %v488, 8
        %v492 = vpop.permute.xlu0 %491
        %v494 = vadd.f32 %v462, %v492
        %vm495 = vcmask 130112
        %496 = vst.msk [vmem:[#allocation4] sm:$0xff] %vm495, %v494
        %497 = vst.msk [vmem:[#allocation2] sm:$0xff] %vm454, %v436
        %498 = vrot.lane.b32.xlu0 %v317, 112
        %v499 = vpop.permute.xlu0 %498
        %500 = vrot.lane.b32.xlu0 %v318, 112
        %v501 = vpop.permute.xlu0 %500
        %v502 = vsel %vm320, %v499, 0
        %v504 = vsel %vm320, %v501, 0
        %506 = vmatpush.xpose.msra.mxu0 0.0
        %507 = vmatpush.xpose.msra.mxu0 0.0
        %508 = vmatpush.xpose.msra.mxu0 0.0
        %509 = vmatpush.xpose.msra.mxu0 0.0
        %510 = vmatpush.xpose.msra.mxu0 0.0
        %511 = vmatpush.xpose.msra.mxu0 0.0
        %512 = vmatpush.xpose.msra.mxu0 0.0
        %513 = vmatpush.xpose.msra.mxu0 0.0
        %514 = vmatpush.xpose.msra.mxu0 0.0
        %515 = vmatpush.xpose.msra.mxu0 0.0
        %516 = vmatpush.xpose.msra.mxu0 0.0
        %517 = vmatpush.xpose.msra.mxu0 0.0
        %518 = vmatpush.xpose.msra.mxu0 0.0
        %519 = vmatpush.xpose.msra.mxu0 0.0
        %520 = vmatpush.xpose.msra.mxu0 0.0
        %521 = vmatpush.xpose.msra.mxu0 %v504
        %522 = vmatmul.f32.gmra.mxu0 %v502
        %v523 = vpop.f32.mrf.mxu0
        %v524 = vadd.f32 0.0, %v523
        %525 = vdwg.mxu0
        %v526 = vld [vmem:[#allocation2] sm:$0xff]
        %v527 = vsel %vm320, %v524, -inf
        %528 = vmax.xlane.f32.xlu0 %v527
        %v529 = vpop.xlane.xlu0 %528
        %v530 = vmax.f32 %v526, %v529
        %v531 = vsub.f32 %v526, %v530
        %v532 = vmul.f32 %v531, 1.442695
        %v533 = vpow.pop %v532
        %535 = vset.pattern.permute.xlu0 2
        %536 = vperm.xlu0 %535, %v530
        %v537 = vpop.permute.xlu0 %536
        %v539 = vsub.f32 %v524, %v537
        %v540 = vmul.f32 %v539, 1.442695
        %v541 = vpow.pop %v540
        %v542 = vld [vmem:[#allocation3] sm:$0xff]
        %v543 = vmul.f32 %v533, %v542
        %v544 = vsel %vm320, %v541, 0.0
        %545 = vadd.xlane.f32.xlu0 %v544
        %v546 = vpop.xlane.xlu0 %545
        %v547 = vadd.f32 %v543, %v546
        %vm548 = vcmask 23568
        %549 = vst.msk [vmem:[#allocation3] sm:$0xff] %vm548, %v547
        %v550 = vld [vmem:[#allocation4] sm:$0xff]
        %552 = vset.pattern.permute.xlu0 2
        %553 = vperm.xlu0 %552, %v533
        %v554 = vpop.permute.xlu0 %553
        %v556 = vmul.f32 %v554, %v550
        %557 = vrot.lane.b32.xlu0 %v319, 112
        %v558 = vpop.permute.xlu0 %557
        %v561 = vsel %vm320, %v541, 0
        %563 = vmatpush.msra.mxu0 0.0
        %564 = vmatpush.msra.mxu0 0.0
        %565 = vmatpush.msra.mxu0 0.0
        %566 = vmatpush.msra.mxu0 0.0
        %567 = vmatpush.msra.mxu0 0.0
        %568 = vmatpush.msra.mxu0 0.0
        %569 = vmatpush.msra.mxu0 0.0
        %570 = vmatpush.msra.mxu0 0.0
        %571 = vmatpush.msra.mxu0 0.0
        %572 = vmatpush.msra.mxu0 0.0
        %573 = vmatpush.msra.mxu0 0.0
        %574 = vmatpush.msra.mxu0 0.0
        %575 = vmatpush.msra.mxu0 0.0
        %576 = vmatpush.msra.mxu0 0.0
        %577 = vmatpush.msra.mxu0 0.0
        %578 = vmatpush.msra.mxu0 %v558
        %579 = vmatmul.f32.gmra.mxu0 %v561
        %v580 = vpop.f32.mrf.mxu0
        %v581 = vadd.f32 0.0, %v580
        %582 = vdwg.mxu0
        %584 = vrot.lane.b32.xlu0 %v581, 16
        %v585 = vpop.permute.xlu0 %584
        %v587 = vadd.f32 %v556, %v585
        %vm588 = vcmask 195712
        %589 = vst.msk [vmem:[#allocation4] sm:$0xff] %vm588, %v587
        %590 = vst.msk [vmem:[#allocation2] sm:$0xff] %vm548, %v530
        %591 = vrot.lane.b32.xlu0 %v317, 104
        %v592 = vpop.permute.xlu0 %591
        %593 = vrot.lane.b32.xlu0 %v318, 104
        %v594 = vpop.permute.xlu0 %593
        %v595 = vsel %vm320, %v592, 0
        %v597 = vsel %vm320, %v594, 0
        %599 = vmatpush.xpose.msra.mxu0 0.0
        %600 = vmatpush.xpose.msra.mxu0 0.0
        %601 = vmatpush.xpose.msra.mxu0 0.0
        %602 = vmatpush.xpose.msra.mxu0 0.0
        %603 = vmatpush.xpose.msra.mxu0 0.0
        %604 = vmatpush.xpose.msra.mxu0 0.0
        %605 = vmatpush.xpose.msra.mxu0 0.0
        %606 = vmatpush.xpose.msra.mxu0 0.0
        %607 = vmatpush.xpose.msra.mxu0 0.0
        %608 = vmatpush.xpose.msra.mxu0 0.0
        %609 = vmatpush.xpose.msra.mxu0 0.0
        %610 = vmatpush.xpose.msra.mxu0 0.0
        %611 = vmatpush.xpose.msra.mxu0 0.0
        %612 = vmatpush.xpose.msra.mxu0 0.0
        %613 = vmatpush.xpose.msra.mxu0 0.0
        %614 = vmatpush.xpose.msra.mxu0 %v597
        %615 = vmatmul.f32.gmra.mxu0 %v595
        %v616 = vpop.f32.mrf.mxu0
        %v617 = vadd.f32 0.0, %v616
        %618 = vdwg.mxu0
        %v619 = vld [vmem:[#allocation2] sm:$0xff]
        %v620 = vsel %vm320, %v617, -inf
        %621 = vmax.xlane.f32.xlu0 %v620
        %v622 = vpop.xlane.xlu0 %621
        %v623 = vmax.f32 %v619, %v622
        %v624 = vsub.f32 %v619, %v623
        %v625 = vmul.f32 %v624, 1.442695
        %v626 = vpow.pop %v625
        %628 = vset.pattern.permute.xlu0 3
        %629 = vperm.xlu0 %628, %v623
        %v630 = vpop.permute.xlu0 %629
        %v632 = vsub.f32 %v617, %v630
        %v633 = vmul.f32 %v632, 1.442695
        %v634 = vpow.pop %v633
        %v635 = vld [vmem:[#allocation3] sm:$0xff]
        %v636 = vmul.f32 %v626, %v635
        %v637 = vsel %vm320, %v634, 0.0
        %638 = vadd.xlane.f32.xlu0 %v637
        %v639 = vpop.xlane.xlu0 %638
        %v640 = vadd.f32 %v636, %v639
        %vm641 = vcmask 31768
        %642 = vst.msk [vmem:[#allocation3] sm:$0xff] %vm641, %v640
        %v643 = vld [vmem:[#allocation4] sm:$0xff]
        %645 = vset.pattern.permute.xlu0 3
        %646 = vperm.xlu0 %645, %v626
        %v647 = vpop.permute.xlu0 %646
        %v649 = vmul.f32 %v647, %v643
        %650 = vrot.lane.b32.xlu0 %v319, 104
        %v651 = vpop.permute.xlu0 %650
        %v654 = vsel %vm320, %v634, 0
        %656 = vmatpush.msra.mxu0 0.0
        %657 = vmatpush.msra.mxu0 0.0
        %658 = vmatpush.msra.mxu0 0.0
        %659 = vmatpush.msra.mxu0 0.0
        %660 = vmatpush.msra.mxu0 0.0
        %661 = vmatpush.msra.mxu0 0.0
        %662 = vmatpush.msra.mxu0 0.0
        %663 = vmatpush.msra.mxu0 0.0
        %664 = vmatpush.msra.mxu0 0.0
        %665 = vmatpush.msra.mxu0 0.0
        %666 = vmatpush.msra.mxu0 0.0
        %667 = vmatpush.msra.mxu0 0.0
        %668 = vmatpush.msra.mxu0 0.0
        %669 = vmatpush.msra.mxu0 0.0
        %670 = vmatpush.msra.mxu0 0.0
        %671 = vmatpush.msra.mxu0 %v651
        %672 = vmatmul.f32.gmra.mxu0 %v654
        %v673 = vpop.f32.mrf.mxu0
        %v674 = vadd.f32 0.0, %v673
        %675 = vdwg.mxu0
        %677 = vrot.lane.b32.xlu0 %v674, 24
        %v678 = vpop.permute.xlu0 %677
        %v680 = vadd.f32 %v649, %v678
        %vm681 = vcmask 261312
        %682 = vst.msk [vmem:[#allocation4] sm:$0xff] %vm681, %v680
        %683 = vst.msk [vmem:[#allocation2] sm:$0xff] %vm641, %v623
        // Predicated region
        $region45: #{self_attention.3} parent=39 // pred_check
          %p684 = pneg %p308
        $region46: #{self_attention.3} parent=39 // pred_check_branch
          %686 = sbr.rel (%p684) target = $region48
        $region47: #{self_attention.3} parent=39 // pred_region
          %v687 = vld [vmem:[#allocation3] sm:$0xff]
          %v688 = vrcp.pop %v687
          %v689 = vld [vmem:[#allocation4] sm:$0xff]
          %691 = vset.pattern.permute.xlu0 0
          %692 = vperm.xlu0 %691, %v688
          %v693 = vpop.permute.xlu0 %692
          %v695 = vmul.f32 %v689, %v693
          %696 = vst.msk [vmem:[#allocation4] sm:$0xff] %vm320, %v695
          %v697 = vld [vmem:[#allocation3] sm:$0xff]
          %v698 = vrcp.pop %v697
          %v699 = vld [vmem:[#allocation4] sm:$0xff]
          %701 = vset.pattern.permute.xlu0 1
          %702 = vperm.xlu0 %701, %v698
          %v703 = vpop.permute.xlu0 %702
          %v705 = vmul.f32 %v699, %v703
          %706 = vst.msk [vmem:[#allocation4] sm:$0xff] %vm495, %v705
          %v707 = vld [vmem:[#allocation3] sm:$0xff]
          %v708 = vrcp.pop %v707
          %v709 = vld [vmem:[#allocation4] sm:$0xff]
          %711 = vset.pattern.permute.xlu0 2
          %712 = vperm.xlu0 %711, %v708
          %v713 = vpop.permute.xlu0 %712
          %v715 = vmul.f32 %v709, %v713
          %716 = vst.msk [vmem:[#allocation4] sm:$0xff] %vm588, %v715
          %v717 = vld [vmem:[#allocation3] sm:$0xff]
          %v718 = vrcp.pop %v717
          %v719 = vld [vmem:[#allocation4] sm:$0xff]
          %721 = vset.pattern.permute.xlu0 3
          %722 = vperm.xlu0 %721, %v718
          %v723 = vpop.permute.xlu0 %722
          %v725 = vmul.f32 %v719, %v723
          %726 = vst.msk [vmem:[#allocation4] sm:$0xff] %vm681, %v725
          %v727 = vld [vmem:[#allocation4] sm:$0xff]
          %v728 = vld [vmem:[%s3] sm:$0xff]
          %v729 = vld [vmem:[%s3 + $0x8] sm:$0xff]
          %v730 = vld [vmem:[%s3 + $0x10] sm:$0xff]
          %v731 = vld [vmem:[%s3 + $0x18] sm:$0xff]
          %v732 = vld [vmem:[%s4] sm:$0x1]
          %v734 = vperm.slane %v732, 0
          %vm736 = vcmask 261120
          %v738 = vsel %vm736, %v727, 0
          %740 = vmatpush.msra.mxu0 0.0
          %741 = vmatpush.msra.mxu0 0.0
          %742 = vmatpush.msra.mxu0 0.0
          %743 = vmatpush.msra.mxu0 0.0
          %744 = vmatpush.msra.mxu0 0.0
          %745 = vmatpush.msra.mxu0 0.0
          %746 = vmatpush.msra.mxu0 0.0
          %747 = vmatpush.msra.mxu0 0.0
          %748 = vmatpush.msra.mxu0 0.0
          %749 = vmatpush.msra.mxu0 0.0
          %750 = vmatpush.msra.mxu0 0.0
          %751 = vmatpush.msra.mxu0 0.0
          %752 = vmatpush.msra.mxu0 %v731
          %753 = vmatpush.msra.mxu0 %v730
          %754 = vmatpush.msra.mxu0 %v729
          %755 = vmatpush.msra.mxu0 %v728
          %756 = vmatmul.f32.gmra.mxu0 %v738
          %v757 = vpop.f32.mrf.mxu0
          %v758 = vadd.f32 %v734, %v757
          %759 = vdwg.mxu0
          %760 = vst.msk [vmem:[%s286] sm:$0xff] %vm736, %v758
        $region48: #{self_attention.3} parent=39 // pred_fallthru
          _
        %s761 = sand.u32 %s174, 1
        %s762 = scalar_lea.sflag [#allocation6], %s761
        %s763 = sand.u32 %s174, 1
        %s764 = smul.addr %s763, 8
        %s765 = scalar_lea.vmem [#allocation5], %s764
        // Predicated region
        $region49: #{self_attention.3} parent=39 // pred_check
          %p766 = pneg %p184
        $region50: #{self_attention.3} parent=39 // pred_check_branch
          %768 = sbr.rel (%p766) target = $region52
        $region51: #{self_attention.3} parent=39 // pred_region
          %770 = vsyncadd %s762, 0
          %s771 = sadd.s32 %s25, %s24
          %s772 = smul.addr %s771, 8
          %s773 = scalar_lea.hbm %s5, %s772
          %s775 = sshll.u32 %s765, 4
          %s776 = int_to_ptr.vmem [resolvable:$true] %s775
          %s777 = sshll.u32 %s773, 4
          %s778 = int_to_ptr.hbm [resolvable:$true] %s777
          %780 = dma.vmem_to_hbm [thread:$0]  %s776, 128, %s778, %s762
        $region52: #{self_attention.3} parent=39 // pred_fallthru
          _
      $region40: #{self_attention.3} parent=5 // pred_fallthru
        _
      %p781 = scmp.le.s32.totalorder 2, %s14
      // Predicated region
      $region53: #{self_attention.3} parent=5 // pred_check
        %p782 = pneg %p781
      $region54: #{self_attention.3} parent=5 // pred_check_branch
        %784 = sbr.rel (%p782) target = $region56
      $region55: #{self_attention.3} parent=5 // pred_region
        %s785 = ssub.s32 %s14, 2
        // Predicated region
        $region57: #{self_attention.3} parent=55 // pred_check
          %p786 = pneg %p190
        $region58: #{self_attention.3} parent=55 // pred_check_branch
          %788 = sbr.rel (%p786) target = $region60
        $region59: #{self_attention.3} parent=55 // pred_region
          %s789 = sand.u32 %s175, 1
          %s790 = scalar_lea.sflag [#allocation6], %s789
          %s791 = sand.u32 %s175, 1
          %s792 = smul.addr %s791, 8
          %s793 = scalar_lea.vmem [#allocation5], %s792
          %795 = dma.done %s790, 128
        $region60: #{self_attention.3} parent=55 // pred_fallthru
          _
      $region56: #{self_attention.3} parent=5 // pred_fallthru
        _
    $region6: #{self_attention.3} parent=1 // loop_footer
      %s18 = sadd.s32 1, %s14
    $region7: #{self_attention.3} parent=1 // loop_footer_branch
      %13 = sbr.rel target = $region3
    $region8: #{self_attention.3} parent=1 // loop_exit
      _
    %796 = vsyncpa [#allocation6], 1
    %s797 = scalar_lea.sflag [#allocation6], 1
    %798 = vsyncpa %s797, 1

</llo_original>
